<compile_context>
chip_gen: v5e
topology: v5e:2x2
jax: 0.10.0
libtpu: 0.0.40
codegen_flags: <defaults>
</compile_context>

<pallas_src>
import functools
import math

import jax
import jax.numpy as jnp
from jax.experimental import pallas as pl
from jax.experimental.pallas import tpu as pltpu

_NEG_BIG = -1e30  # padding value for padded vocab columns (exp() underflows to 0)


# ----------------------------------------------------------------------------
# helpers
# ----------------------------------------------------------------------------
def _round_up(x, m):
    return ((x + m - 1) // m) * m


@functools.lru_cache(maxsize=None)
def _vmem_limit_bytes():
    """Scoped-VMEM limit ~3/4 of physical per-core VMEM (96 MiB on v5e/v6e, 48 MiB on v7x)."""
    cap = 64 * 1024 * 1024
    try:
        cap = int(getattr(pltpu.get_tpu_info(), "vmem_capacity_bytes", cap))
    except Exception:  # pragma: no cover - info query unavailable
        pass
    return max(48 * 1024 * 1024, (cap * 3) // 4)


def _probe_kernel(x_ref, o_ref):
    o_ref[...] = x_ref[...] + 1.0


@functools.lru_cache(maxsize=None)
def _single_buffer_supported():
    """Probe whether pipeline_mode=pl.Buffered(1) (single resident buffer) works here."""
    if not hasattr(pl, "Buffered"):
        return False
    try:
        spec = pl.BlockSpec((8, 128), lambda i: (0, 0), pipeline_mode=pl.Buffered(1))
        out = pl.pallas_call(
            _probe_kernel,
            out_shape=jax.ShapeDtypeStruct((8, 128), jnp.float32),
            grid=(2,),
            in_specs=[spec],
            out_specs=pl.BlockSpec((8, 128), lambda i: (0, 0)),
        )(jnp.zeros((8, 128), jnp.float32))
        jax.block_until_ready(out)
        return True
    except Exception:
        return False


def _const_spec(shape):
    """BlockSpec for an operand whose block never changes across the grid.

    Single-buffered when supported: halves resident weight VMEM (critical for the
    fused adapter on v7x's 64 MiB per-TC VMEM)."""
    nd = len(shape)
    idx = lambda *_, nd=nd: (0,) * nd
    if _single_buffer_supported():
        return pl.BlockSpec(shape, idx, pipeline_mode=pl.Buffered(1))
    return pl.BlockSpec(shape, idx)


def _layernorm(x, gamma, beta, eps=1e-5):
    mu = jnp.mean(x, axis=-1, keepdims=True)
    var = jnp.mean((x - mu) ** 2, axis=-1, keepdims=True)
    return (x - mu) * jax.lax.rsqrt(var + eps) * gamma + beta


def _gelu(x, approx=False):
    if approx:
        # tanh approximation -> EUP slot (relieves VPU pressure on v6e/v7x);
        # changes numerics slightly vs PyTorch's erf GELU, so it is opt-in.
        c = math.sqrt(2.0 / math.pi)
        return 0.5 * x * (1.0 + jnp.tanh(c * (x + 0.044715 * x * x * x)))
    # PyTorch nn.GELU() default (exact erf form).
    return 0.5 * x * (1.0 + jax.lax.erf(x * (1.0 / math.sqrt(2.0))))


# ----------------------------------------------------------------------------
# Kernel 1: fused encoder-stub + Adapter
# ----------------------------------------------------------------------------
def adapter_kernel(
    feat_ref,
    enc_w_ref, enc_b_ref,
    pg_ref, pb_ref,
    w1_ref, b1_ref, w2_ref, b2_ref, w3_ref, b3_ref,
    wp_ref, bp_ref, ws_ref, bs_ref,
    og_ref, ob_ref,
    o_ref,
    *, approx_gelu=False,
):
    # encoder stub (Whisper stand-in): mel features (bf16) -> whisper hidden, f32 accum
    feats = feat_ref[...]
    x = jnp.dot(feats, enc_w_ref[...], preferred_element_type=jnp.float32) + enc_b_ref[...]

    # pre_norm (f32)
    h = _layernorm(x, pg_ref[...], pb_ref[...])

    # mlp: Linear -> GELU -> Dropout(eval identity), x3
    h = _gelu(jnp.dot(h.astype(jnp.bfloat16), w1_ref[...],
                      preferred_element_type=jnp.float32) + b1_ref[...], approx_gelu)
    h = _gelu(jnp.dot(h.astype(jnp.bfloat16), w2_ref[...],
                      preferred_element_type=jnp.float32) + b2_ref[...], approx_gelu)
    h = _gelu(jnp.dot(h.astype(jnp.bfloat16), w3_ref[...],
                      preferred_element_type=jnp.float32) + b3_ref[...], approx_gelu)

    # projection + skip_connection (Linear since input_dim != output_dim)
    proj = jnp.dot(h.astype(jnp.bfloat16), wp_ref[...],
                   preferred_element_type=jnp.float32) + bp_ref[...]
    skip = jnp.dot(x.astype(jnp.bfloat16), ws_ref[...],
                   preferred_element_type=jnp.float32) + bs_ref[...]

    # post_norm
    o_ref[...] = _layernorm(proj + skip, og_ref[...], ob_ref[...])


_ADAPTER_PARAM_ORDER = [
    "enc_w", "enc_b", "pre_gamma", "pre_beta",
    "w1", "b1", "w2", "b2", "w3", "b3",
    "wp", "bp", "ws", "bs", "post_gamma", "post_beta",
]


def adapter_pallas(feats, params, *, row_tile=256, approx_gelu=False):
    """feats: (N, n_mels) f32 -> (N, d_llama) f32.  Rows are tiled and padded."""
    n, n_mels = feats.shape
    d_out = params["post_gamma"].shape[-1]

    rt = min(row_tile, _round_up(n, 8))
    n_pad = _round_up(n, rt)

    # bf16 activations at the pallas_call boundary (accum stays f32) and lane-dense K:
    # pad n_mels (80 in production Whisper) to a 128 multiple; zero rows in enc_w match.
    k_pad = _round_up(n_mels, 128)
    feats_p = jnp.pad(feats.astype(jnp.bfloat16),
                      ((0, n_pad - n), (0, k_pad - n_mels)))
    p = dict(params)
    if k_pad != n_mels:
        p["enc_w"] = jnp.pad(params["enc_w"], ((0, k_pad - n_mels), (0, 0)))

    in_specs = [pl.BlockSpec((rt, k_pad), lambda i: (i, 0))]
    args = [feats_p]
    for name in _ADAPTER_PARAM_ORDER:
        w = p[name]
        in_specs.append(_const_spec(w.shape))   # single resident copy of each weight
        args.append(w)

    out = pl.pallas_call(
        functools.partial(adapter_kernel, approx_gelu=approx_gelu),
        out_shape=jax.ShapeDtypeStruct((n_pad, d_out), jnp.float32),
        grid=(n_pad // rt,),
        in_specs=in_specs,
        out_specs=pl.BlockSpec((rt, d_out), lambda i: (i, 0)),
        compiler_params=pltpu.CompilerParams(
            dimension_semantics=("parallel",),          # megacore: shard row tiles
            vmem_limit_bytes=_vmem_limit_bytes(),
        ),
    )(*args)
    return out[:n]


# ----------------------------------------------------------------------------
# Kernel 2: token-embedding DMA gather (scalar-prefetch ids, table stays in HBM)
# ----------------------------------------------------------------------------
def embed_gather_kernel(ids_ref, table_hbm, out_ref, sems):
    i = pl.program_id(0)
    rt = out_ref.shape[0]

    # Gather rows straight from HBM into the pipelined output block (no VMEM->VMEM
    # staging copy).  Issue all row DMAs, then wait; the wait descriptor mirrors
    # the start descriptor exactly.
    for r in range(rt):
        idx = ids_ref[i * rt + r]
        pltpu.make_async_copy(
            table_hbm.at[pl.ds(idx, 1), :], out_ref.at[pl.ds(r, 1), :], sems.at[r]
        ).start()
    for r in range(rt):
        idx = ids_ref[i * rt + r]
        pltpu.make_async_copy(
            table_hbm.at[pl.ds(idx, 1), :], out_ref.at[pl.ds(r, 1), :], sems.at[r]
        ).wait()


def embed_pallas(ids, table, *, row_tile=128):
    """ids: (N,) int32, table: (V, D) -> (N, D) gathered embeddings."""
    n = ids.shape[0]
    d = table.shape[1]

    rt = min(row_tile, _round_up(n, 8))
    n_pad = _round_up(n, rt)
    ids_p = jnp.pad(ids.astype(jnp.int32), (0, n_pad - n))  # pad with index 0 (discarded)

    out = pl.pallas_call(
        embed_gather_kernel,
        out_shape=jax.ShapeDtypeStruct((n_pad, d), table.dtype),
        grid_spec=pltpu.PrefetchScalarGridSpec(
            num_scalar_prefetch=1,
            grid=(n_pad // rt,),
            in_specs=[pl.BlockSpec(memory_space=pl.ANY)],      # table stays in HBM
            out_specs=pl.BlockSpec((rt, d), lambda i, ids: (i, 0)),
            scratch_shapes=[pltpu.SemaphoreType.DMA((rt,))],
        ),
        compiler_params=pltpu.CompilerParams(
            dimension_semantics=("parallel",),                 # tiles independent; free on v7x
        ),
    )(ids_p, table)
    return out[:n]


# ----------------------------------------------------------------------------
# Kernel 3: fused LM head + shifted cross-entropy (online logsumexp over vocab tiles)
# ----------------------------------------------------------------------------
def lm_head_ce_kernel(
    x_ref, w_ref, b_ref, lbl_ref,
    logits_ref, per_row_ref,
    m_sc, l_sc, c_sc,
):
    j = pl.program_id(1)
    nj = pl.num_programs(1)

    @pl.when(j == 0)
    def _():
        m_sc[...] = jnp.full_like(m_sc, -jnp.inf)
        l_sc[...] = jnp.zeros_like(l_sc)
        c_sc[...] = jnp.zeros_like(c_sc)

    logits = jnp.dot(x_ref[...], w_ref[...], preferred_element_type=jnp.float32) + b_ref[...]
    logits_ref[...] = logits.astype(logits_ref.dtype)        # bf16 writeback (module returns logits)

    # online logsumexp across vocab tiles (f32)
    m_prev = m_sc[...]
    m_new = jnp.maximum(m_prev, jnp.max(logits, axis=-1, keepdims=True))
    l_sc[...] = l_sc[...] * jnp.exp(m_prev - m_new) + \
        jnp.sum(jnp.exp(logits - m_new), axis=-1, keepdims=True)
    m_sc[...] = m_new

    # correct-class logit (labels falling inside this vocab tile)
    labels = lbl_ref[...]                                    # (rt, 1) int32, -100 = ignore
    rt, vt = logits.shape
    col = jax.lax.broadcasted_iota(jnp.int32, (rt, vt), 1) + j * vt
    hit = col == labels
    c_sc[...] = c_sc[...] + jnp.sum(jnp.where(hit, logits, 0.0), axis=-1, keepdims=True)

    @pl.when(j == nj - 1)
    def _():
        valid = (labels != -100).astype(jnp.float32)
        lse = m_sc[...] + jnp.log(l_sc[...])
        per_row_ref[...] = (lse - c_sc[...]) * valid


def lm_head_ce_pallas(x, w, b, shift_labels, *, row_tile=512, vocab_tile=512):
    """x: (N, D), w: (D, V) bf16, b: (1, V) f32, shift_labels: (N, 1) int32.

    Returns (logits (N, V) bf16, per_row_loss (N, 1) f32 with -100 rows zeroed).
    The D*V weight is re-streamed once per row tile, so a large row_tile (512+)
    amortizes the dominant HBM stream; x crosses the boundary in bf16.
    """
    n, d = x.shape
    v = w.shape[1]

    rt = min(row_tile, _round_up(n, 8))
    vt = min(vocab_tile, _round_up(v, 128))
    n_pad = _round_up(n, rt)
    v_pad = _round_up(v, vt)

    x_p = jnp.pad(x.astype(jnp.bfloat16), ((0, n_pad - n), (0, 0)))
    w_p = jnp.pad(w, ((0, 0), (0, v_pad - v)))
    b_p = jnp.pad(b, ((0, 0), (0, v_pad - v)), constant_values=_NEG_BIG)
    lbl_p = jnp.pad(shift_labels, ((0, n_pad - n), (0, 0)), constant_values=-100)

    logits, per_row = pl.pallas_call(
        lm_head_ce_kernel,
        out_shape=(
            jax.ShapeDtypeStruct((n_pad, v_pad), jnp.bfloat16),   # bf16 logits: halves writeback
            jax.ShapeDtypeStruct((n_pad, 1), jnp.float32),
        ),
        grid=(n_pad // rt, v_pad // vt),
        in_specs=[
            pl.BlockSpec((rt, d), lambda i, j: (i, 0)),
            pl.BlockSpec((d, vt), lambda i, j: (0, j)),
            pl.BlockSpec((1, vt), lambda i, j: (0, j)),
            pl.BlockSpec((rt, 1), lambda i, j: (i, 0)),
        ],
        out_specs=(
            pl.BlockSpec((rt, vt), lambda i, j: (i, j)),
            pl.BlockSpec((rt, 1), lambda i, j: (i, 0)),
        ),
        scratch_shapes=[
            pltpu.VMEM((rt, 1), jnp.float32),   # running max
            pltpu.VMEM((rt, 1), jnp.float32),   # running sum-exp
            pltpu.VMEM((rt, 1), jnp.float32),   # correct-class logit
        ],
        compiler_params=pltpu.CompilerParams(
            dimension_semantics=("parallel", "arbitrary"),   # rows across cores, vocab reduced
            vmem_limit_bytes=_vmem_limit_bytes(),
        ),
    )(x_p, w_p, b_p, lbl_p)
    return logits[:n, :v], per_row[:n]


# ----------------------------------------------------------------------------
# Parameters & forward pass (glue)
# ----------------------------------------------------------------------------
def init_params(key, *, n_mels, d_whisper, hidden_dims, d_llama, vocab):
    ks = iter(jax.random.split(key, 16))
    s = 0.02
    h1, h2, h3 = hidden_dims
    bf = jnp.bfloat16
    p = {}
    # encoder stub (stand-in for Whisper encoder) — matmul weights in bf16
    p["enc_w"] = (jax.random.normal(next(ks), (n_mels, d_whisper), jnp.float32) * s).astype(bf)
    p["enc_b"] = jnp.zeros((1, d_whisper), jnp.float32)
    # Adapter
    p["pre_gamma"] = jnp.ones((1, d_whisper), jnp.float32)
    p["pre_beta"] = jnp.zeros((1, d_whisper), jnp.float32)
    p["w1"] = (jax.random.normal(next(ks), (d_whisper, h1), jnp.float32) * s).astype(bf)
    p["b1"] = jnp.zeros((1, h1), jnp.float32)
    p["w2"] = (jax.random.normal(next(ks), (h1, h2), jnp.float32) * s).astype(bf)
    p["b2"] = jnp.zeros((1, h2), jnp.float32)
    p["w3"] = (jax.random.normal(next(ks), (h2, h3), jnp.float32) * s).astype(bf)
    p["b3"] = jnp.zeros((1, h3), jnp.float32)
    p["wp"] = (jax.random.normal(next(ks), (h3, d_llama), jnp.float32) * s).astype(bf)
    p["bp"] = jnp.zeros((1, d_llama), jnp.float32)
    p["ws"] = (jax.random.normal(next(ks), (d_whisper, d_llama), jnp.float32) * s).astype(bf)
    p["bs"] = jnp.zeros((1, d_llama), jnp.float32)
    p["post_gamma"] = jnp.ones((1, d_llama), jnp.float32)
    p["post_beta"] = jnp.zeros((1, d_llama), jnp.float32)
    # Llama stand-in: token embedding (f32, gathered) + LM head (bf16 matmul weight)
    p["embed"] = jax.random.normal(next(ks), (vocab, d_llama), jnp.float32) * s
    p["lm_w"] = (jax.random.normal(next(ks), (d_llama, vocab), jnp.float32) * s).astype(bf)
    p["lm_b"] = jnp.zeros((1, vocab), jnp.float32)
    return p


def speech_to_text_forward(
    params, input_features, input_ids, labels, attention_mask,
    *, adapter_row_tile=256, lm_row_tile=512, vocab_tile=512, embed_row_tile=128,
    approx_gelu=False,
):
    b, n_mels, t_audio = input_features.shape
    _, t_text = input_ids.shape
    d_llama = params["embed"].shape[1]
    vocab = params["embed"].shape[0]

    # --- Whisper encoder stand-in + Adapter: one fused Pallas kernel per row tile
    feats = jnp.transpose(input_features, (0, 2, 1)).reshape(b * t_audio, n_mels)
    audio_emb = adapter_pallas(feats, params, row_tile=adapter_row_tile,
                               approx_gelu=approx_gelu)                 # (B*T_a, D)
    audio_emb = audio_emb.reshape(b, t_audio, d_llama)

    # --- Token embeddings: Pallas DMA gather
    text_emb = embed_pallas(input_ids.reshape(-1), params["embed"], row_tile=embed_row_tile)
    text_emb = text_emb.reshape(b, t_text, d_llama)

    # --- concatenate audio + text along sequence axis
    combined = jnp.concatenate([audio_emb, text_emb], axis=1)              # (B, S, D)
    s = t_audio + t_text

    # --- labels / attention_mask padding (mirrors torch.cat logic)
    label_padding = jnp.full((b, t_audio), -100, dtype=labels.dtype)
    labels_full = jnp.concatenate([label_padding, labels], axis=1)         # (B, S)
    if attention_mask is not None:
        attend = jnp.full((b, t_audio), 1, dtype=attention_mask.dtype)
        attention_mask = jnp.concatenate([attend, attention_mask], axis=1)  # unused by stand-in

    # causal-LM shift: position t is scored against labels_full[t+1]; last position ignored
    shift_labels = jnp.concatenate(
        [labels_full[:, 1:], jnp.full((b, 1), -100, labels_full.dtype)], axis=1
    ).reshape(b * s, 1).astype(jnp.int32)

    # --- fused LM head + cross-entropy (logits materialized once in bf16, loss on-chip)
    logits_flat, per_row_loss = lm_head_ce_pallas(
        combined.reshape(b * s, d_llama), params["lm_w"], params["lm_b"], shift_labels,
        row_tile=lm_row_tile, vocab_tile=vocab_tile,
    )
    logits = logits_flat.reshape(b, s, vocab)

    # mean over valid tokens; NaN if every label is -100 (matches PyTorch CE ignore_index)
    n_valid = jnp.sum((shift_labels != -100).astype(jnp.float32))
    loss = jnp.sum(per_row_loss) / n_valid

    return {"loss": loss, "logits": logits}


# ----------------------------------------------------------------------------
if __name__ == "__main__":
    B = 2
    N_MELS = 16
    T_AUDIO = 16
    D_WHISPER = 64
    HIDDEN_DIMS = [128, 64, 128]      # scaled-down [2048, 1024, 2048]
    D_LLAMA = 128
    VOCAB = 256
    T_TEXT = 8

    key = jax.random.PRNGKey(0)
    k_par, k_feat, k_ids, k_lab = jax.random.split(key, 4)

    params = init_params(
        k_par, n_mels=N_MELS, d_whisper=D_WHISPER,
        hidden_dims=HIDDEN_DIMS, d_llama=D_LLAMA, vocab=VOCAB,
    )

    input_features = jax.random.normal(k_feat, (B, N_MELS, T_AUDIO), jnp.float32)
    input_ids = jax.random.randint(k_ids, (B, T_TEXT), 0, VOCAB, dtype=jnp.int32)
    labels = jax.random.randint(k_lab, (B, T_TEXT), 0, VOCAB, dtype=jnp.int32)
    attention_mask = jnp.ones((B, T_TEXT), dtype=jnp.int32)

    # Small tile overrides so the toy shapes exercise multi-tile grids
    # (production defaults: adapter rt=256, LM rt=512, vocab_tile=512).
    out = speech_to_text_forward(
        params, input_features, input_ids, labels, attention_mask,
        adapter_row_tile=16, lm_row_tile=16, vocab_tile=128, embed_row_tile=8,
    )
    jax.block_until_ready(out)

    assert out["logits"].shape == (B, T_AUDIO + T_TEXT, VOCAB)
    assert out["loss"].shape == ()
    assert bool(jnp.isfinite(out["loss"]))
    print("KERNEL_OK")
</pallas_src>

<mosaic_0001>
module attributes {stable_mosaic.version = 11 : i64} {
  func.func @_probe_kernel(%arg0: i32, %arg1: memref<8x128xf32, #tpu.memory_space<vmem>>, %arg2: memref<8x128xf32, #tpu.memory_space<vmem>>) attributes {dimension_semantics = [#tpu.dimension_semantics<arbitrary>], iteration_bounds = array<i64: 2>, scalar_prefetch = 0 : i64, scratch_operands = 0 : i64, tpu.core_type = #tpu.core_type<tc>, window_params = [{pipeline_mode = #tpu.pipeline_mode<synchronous>, transform_indices = @transform_0, window_bounds = array<i64: 8, 128>}, {pipeline_mode = #tpu.pipeline_mode<synchronous>, transform_indices = @transform_1, window_bounds = array<i64: 8, 128>}]} {
    %c0 = arith.constant 0 : index
    %c0_0 = arith.constant 0 : index
    %0 = vector.load %arg1[%c0, %c0_0] : memref<8x128xf32, #tpu.memory_space<vmem>>, vector<8x128xf32>
    %cst = arith.constant 1.000000e+00 : f32
    %1 = vector.broadcast %cst : f32 to vector<8x128xf32>
    %2 = arith.addf %0, %1 : vector<8x128xf32>
    %c0_1 = arith.constant 0 : index
    %c0_2 = arith.constant 0 : index
    %3 = vector.load %arg2[%c0_1, %c0_2] : memref<8x128xf32, #tpu.memory_space<vmem>>, vector<8x128xf32>
    tpu.vector_store %arg2[%c0_1, %c0_2], %2 {strides = array<i32>} : memref<8x128xf32, #tpu.memory_space<vmem>>, vector<8x128xf32>,
    return
  }
  func.func @transform_0(%arg0: i32) -> (i32, i32) {
    %c0_i32 = arith.constant 0 : i32
    %c0_i32_0 = arith.constant 0 : i32
    %c0_i32_1 = arith.constant 0 : i32
    return %c0_i32, %c0_i32_0 : i32, i32
  }
  func.func @transform_1(%arg0: i32) -> (i32, i32) {
    %c0_i32 = arith.constant 0 : i32
    %c0_i32_0 = arith.constant 0 : i32
    %c0_i32_1 = arith.constant 0 : i32
    return %c0_i32, %c0_i32_0 : i32, i32
  }
}

module attributes {stable_mosaic.version = 11 : i64} {
  func.func @adapter_kernel(%arg0: i32, %arg1: memref<16x128xbf16, #tpu.memory_space<vmem>>, %arg2: memref<128x64xbf16, #tpu.memory_space<vmem>>, %arg3: memref<1x64xf32, #tpu.memory_space<vmem>>, %arg4: memref<1x64xf32, #tpu.memory_space<vmem>>, %arg5: memref<1x64xf32, #tpu.memory_space<vmem>>, %arg6: memref<64x128xbf16, #tpu.memory_space<vmem>>, %arg7: memref<1x128xf32, #tpu.memory_space<vmem>>, %arg8: memref<128x64xbf16, #tpu.memory_space<vmem>>, %arg9: memref<1x64xf32, #tpu.memory_space<vmem>>, %arg10: memref<64x128xbf16, #tpu.memory_space<vmem>>, %arg11: memref<1x128xf32, #tpu.memory_space<vmem>>, %arg12: memref<128x128xbf16, #tpu.memory_space<vmem>>, %arg13: memref<1x128xf32, #tpu.memory_space<vmem>>, %arg14: memref<64x128xbf16, #tpu.memory_space<vmem>>, %arg15: memref<1x128xf32, #tpu.memory_space<vmem>>, %arg16: memref<1x128xf32, #tpu.memory_space<vmem>>, %arg17: memref<1x128xf32, #tpu.memory_space<vmem>>, %arg18: memref<16x128xf32, #tpu.memory_space<vmem>>) attributes {dimension_semantics = [#tpu.dimension_semantics<parallel>], iteration_bounds = array<i64: 2>, scalar_prefetch = 0 : i64, scratch_operands = 0 : i64, tpu.core_type = #tpu.core_type<tc>, window_params = [{transform_indices = @transform_0, window_bounds = array<i64: 16, 128>}, {pipeline_mode = #tpu.pipeline_mode<synchronous>, transform_indices = @transform_1, window_bounds = array<i64: 128, 64>}, {pipeline_mode = #tpu.pipeline_mode<synchronous>, transform_indices = @transform_2, window_bounds = array<i64: 1, 64>}, {pipeline_mode = #tpu.pipeline_mode<synchronous>, transform_indices = @transform_3, window_bounds = array<i64: 1, 64>}, {pipeline_mode = #tpu.pipeline_mode<synchronous>, transform_indices = @transform_4, window_bounds = array<i64: 1, 64>}, {pipeline_mode = #tpu.pipeline_mode<synchronous>, transform_indices = @transform_5, window_bounds = array<i64: 64, 128>}, {pipeline_mode = #tpu.pipeline_mode<synchronous>, transform_indices = @transform_6, window_bounds = array<i64: 1, 128>}, {pipeline_mode = #tpu.pipeline_mode<synchronous>, transform_indices = @transform_7, window_bounds = array<i64: 128, 64>}, {pipeline_mode = #tpu.pipeline_mode<synchronous>, transform_indices = @transform_8, window_bounds = array<i64: 1, 64>}, {pipeline_mode = #tpu.pipeline_mode<synchronous>, transform_indices = @transform_9, window_bounds = array<i64: 64, 128>}, {pipeline_mode = #tpu.pipeline_mode<synchronous>, transform_indices = @transform_10, window_bounds = array<i64: 1, 128>}, {pipeline_mode = #tpu.pipeline_mode<synchronous>, transform_indices = @transform_11, window_bounds = array<i64: 128, 128>}, {pipeline_mode = #tpu.pipeline_mode<synchronous>, transform_indices = @transform_12, window_bounds = array<i64: 1, 128>}, {pipeline_mode = #tpu.pipeline_mode<synchronous>, transform_indices = @transform_13, window_bounds = array<i64: 64, 128>}, {pipeline_mode = #tpu.pipeline_mode<synchronous>, transform_indices = @transform_14, window_bounds = array<i64: 1, 128>}, {pipeline_mode = #tpu.pipeline_mode<synchronous>, transform_indices = @transform_15, window_bounds = array<i64: 1, 128>}, {pipeline_mode = #tpu.pipeline_mode<synchronous>, transform_indices = @transform_16, window_bounds = array<i64: 1, 128>}, {transform_indices = @transform_17, window_bounds = array<i64: 16, 128>}]} {
    %c0 = arith.constant 0 : index
    %c0_0 = arith.constant 0 : index
    %0 = vector.load %arg1[%c0, %c0_0] : memref<16x128xbf16, #tpu.memory_space<vmem>>, vector<16x128xbf16>
    %c0_1 = arith.constant 0 : index
    %c0_2 = arith.constant 0 : index
    %1 = vector.load %arg2[%c0_1, %c0_2] : memref<128x64xbf16, #tpu.memory_space<vmem>>, vector<128x64xbf16>
    %cst = arith.constant dense<0.000000e+00> : vector<16x64xf32>
    %2 = tpu.matmul %0, %1, %cst {dimension_numbers = #tpu.dot_dimension_numbers<[1], [0], [0], [1], [0, 0, 1, 1], [], []>} : vector<16x128xbf16>, vector<128x64xbf16>, vector<16x64xf32> -> vector<16x64xf32>
    %c0_3 = arith.constant 0 : index
    %c0_4 = arith.constant 0 : index
    %3 = vector.load %arg3[%c0_3, %c0_4] : memref<1x64xf32, #tpu.memory_space<vmem>>, vector<1x64xf32>
    %4 = vector.broadcast %3 : vector<1x64xf32> to vector<16x64xf32>
    %5 = arith.addf %2, %4 : vector<16x64xf32>
    %c0_5 = arith.constant 0 : index
    %c0_6 = arith.constant 0 : index
    %6 = vector.load %arg4[%c0_5, %c0_6] : memref<1x64xf32, #tpu.memory_space<vmem>>, vector<1x64xf32>
    %c0_7 = arith.constant 0 : index
    %c0_8 = arith.constant 0 : index
    %7 = vector.load %arg5[%c0_7, %c0_8] : memref<1x64xf32, #tpu.memory_space<vmem>>, vector<1x64xf32>
    %cst_9 = arith.constant dense<0.000000e+00> : vector<16xf32>
    %8 = vector.multi_reduction <add>, %5, %cst_9 [1] : vector<16x64xf32> to vector<16xf32>
    %9 = vector.shape_cast %8 : vector<16xf32> to vector<16x1xf32>
    %cst_10 = arith.constant 6.400000e+01 : f32
    %10 = vector.broadcast %cst_10 : f32 to vector<16x1xf32>
    %11 = arith.divf %9, %10 : vector<16x1xf32>
    %12 = vector.broadcast %11 : vector<16x1xf32> to vector<16x64xf32>
    %13 = arith.subf %5, %12 : vector<16x64xf32>
    %14 = arith.mulf %13, %13 : vector<16x64xf32>
    %cst_11 = arith.constant dense<0.000000e+00> : vector<16xf32>
    %15 = vector.multi_reduction <add>, %14, %cst_11 [1] : vector<16x64xf32> to vector<16xf32>
    %16 = vector.shape_cast %15 : vector<16xf32> to vector<16x1xf32>
    %cst_12 = arith.constant 6.400000e+01 : f32
    %17 = vector.broadcast %cst_12 : f32 to vector<16x1xf32>
    %18 = arith.divf %16, %17 : vector<16x1xf32>
    %19 = vector.broadcast %11 : vector<16x1xf32> to vector<16x64xf32>
    %20 = arith.subf %5, %19 : vector<16x64xf32>
    %cst_13 = arith.constant 9.99999974E-6 : f32
    %21 = vector.broadcast %cst_13 : f32 to vector<16x1xf32>
    %22 = arith.addf %18, %21 : vector<16x1xf32>
    %23 = math.rsqrt %22 : vector<16x1xf32>
    %24 = vector.broadcast %23 : vector<16x1xf32> to vector<16x64xf32>
    %25 = arith.mulf %20, %24 : vector<16x64xf32>
    %26 = vector.broadcast %6 : vector<1x64xf32> to vector<16x64xf32>
    %27 = arith.mulf %25, %26 : vector<16x64xf32>
    %28 = vector.broadcast %7 : vector<1x64xf32> to vector<16x64xf32>
    %29 = arith.addf %27, %28 : vector<16x64xf32>
    %30 = arith.truncf %29 : vector<16x64xf32> to vector<16x64xbf16>
    %c0_14 = arith.constant 0 : index
    %c0_15 = arith.constant 0 : index
    %31 = vector.load %arg6[%c0_14, %c0_15] : memref<64x128xbf16, #tpu.memory_space<vmem>>, vector<64x128xbf16>
    %cst_16 = arith.constant dense<0.000000e+00> : vector<16x128xf32>
    %32 = tpu.matmul %30, %31, %cst_16 {dimension_numbers = #tpu.dot_dimension_numbers<[1], [0], [0], [1], [0, 0, 1, 1], [], []>} : vector<16x64xbf16>, vector<64x128xbf16>, vector<16x128xf32> -> vector<16x128xf32>
    %c0_17 = arith.constant 0 : index
    %c0_18 = arith.constant 0 : index
    %33 = vector.load %arg7[%c0_17, %c0_18] : memref<1x128xf32, #tpu.memory_space<vmem>>, vector<1x128xf32>
    %34 = vector.broadcast %33 : vector<1x128xf32> to vector<16x128xf32>
    %35 = arith.addf %32, %34 : vector<16x128xf32>
    %cst_19 = arith.constant 5.000000e-01 : f32
    %36 = vector.broadcast %cst_19 : f32 to vector<16x128xf32>
    %37 = arith.mulf %36, %35 : vector<16x128xf32>
    %cst_20 = arith.constant 0.707106769 : f32
    %38 = vector.broadcast %cst_20 : f32 to vector<16x128xf32>
    %39 = arith.mulf %35, %38 : vector<16x128xf32>
    %40 = math.erf %39 : vector<16x128xf32>
    %cst_21 = arith.constant 1.000000e+00 : f32
    %41 = vector.broadcast %cst_21 : f32 to vector<16x128xf32>
    %42 = arith.addf %41, %40 : vector<16x128xf32>
    %43 = arith.mulf %37, %42 : vector<16x128xf32>
    %44 = arith.truncf %43 : vector<16x128xf32> to vector<16x128xbf16>
    %c0_22 = arith.constant 0 : index
    %c0_23 = arith.constant 0 : index
    %45 = vector.load %arg8[%c0_22, %c0_23] : memref<128x64xbf16, #tpu.memory_space<vmem>>, vector<128x64xbf16>
    %cst_24 = arith.constant dense<0.000000e+00> : vector<16x64xf32>
    %46 = tpu.matmul %44, %45, %cst_24 {dimension_numbers = #tpu.dot_dimension_numbers<[1], [0], [0], [1], [0, 0, 1, 1], [], []>} : vector<16x128xbf16>, vector<128x64xbf16>, vector<16x64xf32> -> vector<16x64xf32>
    %c0_25 = arith.constant 0 : index
    %c0_26 = arith.constant 0 : index
    %47 = vector.load %arg9[%c0_25, %c0_26] : memref<1x64xf32, #tpu.memory_space<vmem>>, vector<1x64xf32>
    %48 = vector.broadcast %47 : vector<1x64xf32> to vector<16x64xf32>
    %49 = arith.addf %46, %48 : vector<16x64xf32>
    %cst_27 = arith.constant 5.000000e-01 : f32
    %50 = vector.broadcast %cst_27 : f32 to vector<16x64xf32>
    %51 = arith.mulf %50, %49 : vector<16x64xf32>
    %cst_28 = arith.constant 0.707106769 : f32
    %52 = vector.broadcast %cst_28 : f32 to vector<16x64xf32>
    %53 = arith.mulf %49, %52 : vector<16x64xf32>
    %54 = math.erf %53 : vector<16x64xf32>
    %cst_29 = arith.constant 1.000000e+00 : f32
    %55 = vector.broadcast %cst_29 : f32 to vector<16x64xf32>
    %56 = arith.addf %55, %54 : vector<16x64xf32>
    %57 = arith.mulf %51, %56 : vector<16x64xf32>
    %58 = arith.truncf %57 : vector<16x64xf32> to vector<16x64xbf16>
    %c0_30 = arith.constant 0 : index
    %c0_31 = arith.constant 0 : index
    %59 = vector.load %arg10[%c0_30, %c0_31] : memref<64x128xbf16, #tpu.memory_space<vmem>>, vector<64x128xbf16>
    %cst_32 = arith.constant dense<0.000000e+00> : vector<16x128xf32>
    %60 = tpu.matmul %58, %59, %cst_32 {dimension_numbers = #tpu.dot_dimension_numbers<[1], [0], [0], [1], [0, 0, 1, 1], [], []>} : vector<16x64xbf16>, vector<64x128xbf16>, vector<16x128xf32> -> vector<16x128xf32>
    %c0_33 = arith.constant 0 : index
    %c0_34 = arith.constant 0 : index
    %61 = vector.load %arg11[%c0_33, %c0_34] : memref<1x128xf32, #tpu.memory_space<vmem>>, vector<1x128xf32>
    %62 = vector.broadcast %61 : vector<1x128xf32> to vector<16x128xf32>
    %63 = arith.addf %60, %62 : vector<16x128xf32>
    %cst_35 = arith.constant 5.000000e-01 : f32
    %64 = vector.broadcast %cst_35 : f32 to vector<16x128xf32>
    %65 = arith.mulf %64, %63 : vector<16x128xf32>
    %cst_36 = arith.constant 0.707106769 : f32
    %66 = vector.broadcast %cst_36 : f32 to vector<16x128xf32>
    %67 = arith.mulf %63, %66 : vector<16x128xf32>
    %68 = math.erf %67 : vector<16x128xf32>
    %cst_37 = arith.constant 1.000000e+00 : f32
    %69 = vector.broadcast %cst_37 : f32 to vector<16x128xf32>
    %70 = arith.addf %69, %68 : vector<16x128xf32>
    %71 = arith.mulf %65, %70 : vector<16x128xf32>
    %72 = arith.truncf %71 : vector<16x128xf32> to vector<16x128xbf16>
    %c0_38 = arith.constant 0 : index
    %c0_39 = arith.constant 0 : index
    %73 = vector.load %arg12[%c0_38, %c0_39] : memref<128x128xbf16, #tpu.memory_space<vmem>>, vector<128x128xbf16>
    %cst_40 = arith.constant dense<0.000000e+00> : vector<16x128xf32>
    %74 = tpu.matmul %72, %73, %cst_40 {dimension_numbers = #tpu.dot_dimension_numbers<[1], [0], [0], [1], [0, 0, 1, 1], [], []>} : vector<16x128xbf16>, vector<128x128xbf16>, vector<16x128xf32> -> vector<16x128xf32>
    %c0_41 = arith.constant 0 : index
    %c0_42 = arith.constant 0 : index
    %75 = vector.load %arg13[%c0_41, %c0_42] : memref<1x128xf32, #tpu.memory_space<vmem>>, vector<1x128xf32>
    %76 = vector.broadcast %75 : vector<1x128xf32> to vector<16x128xf32>
    %77 = arith.addf %74, %76 : vector<16x128xf32>
    %78 = arith.truncf %5 : vector<16x64xf32> to vector<16x64xbf16>
    %c0_43 = arith.constant 0 : index
    %c0_44 = arith.constant 0 : index
    %79 = vector.load %arg14[%c0_43, %c0_44] : memref<64x128xbf16, #tpu.memory_space<vmem>>, vector<64x128xbf16>
    %cst_45 = arith.constant dense<0.000000e+00> : vector<16x128xf32>
    %80 = tpu.matmul %78, %79, %cst_45 {dimension_numbers = #tpu.dot_dimension_numbers<[1], [0], [0], [1], [0, 0, 1, 1], [], []>} : vector<16x64xbf16>, vector<64x128xbf16>, vector<16x128xf32> -> vector<16x128xf32>
    %c0_46 = arith.constant 0 : index
    %c0_47 = arith.constant 0 : index
    %81 = vector.load %arg15[%c0_46, %c0_47] : memref<1x128xf32, #tpu.memory_space<vmem>>, vector<1x128xf32>
    %82 = vector.broadcast %81 : vector<1x128xf32> to vector<16x128xf32>
    %83 = arith.addf %80, %82 : vector<16x128xf32>
    %84 = arith.addf %77, %83 : vector<16x128xf32>
    %c0_48 = arith.constant 0 : index
    %c0_49 = arith.constant 0 : index
    %85 = vector.load %arg16[%c0_48, %c0_49] : memref<1x128xf32, #tpu.memory_space<vmem>>, vector<1x128xf32>
    %c0_50 = arith.constant 0 : index
    %c0_51 = arith.constant 0 : index
    %86 = vector.load %arg17[%c0_50, %c0_51] : memref<1x128xf32, #tpu.memory_space<vmem>>, vector<1x128xf32>
    %cst_52 = arith.constant dense<0.000000e+00> : vector<16xf32>
    %87 = vector.multi_reduction <add>, %84, %cst_52 [1] : vector<16x128xf32> to vector<16xf32>
    %88 = vector.shape_cast %87 : vector<16xf32> to vector<16x1xf32>
    %cst_53 = arith.constant 1.280000e+02 : f32
    %89 = vector.broadcast %cst_53 : f32 to vector<16x1xf32>
    %90 = arith.divf %88, %89 : vector<16x1xf32>
    %91 = vector.broadcast %90 : vector<16x1xf32> to vector<16x128xf32>
    %92 = arith.subf %84, %91 : vector<16x128xf32>
    %93 = arith.mulf %92, %92 : vector<16x128xf32>
    %cst_54 = arith.constant dense<0.000000e+00> : vector<16xf32>
    %94 = vector.multi_reduction <add>, %93, %cst_54 [1] : vector<16x128xf32> to vector<16xf32>
    %95 = vector.shape_cast %94 : vector<16xf32> to vector<16x1xf32>
    %cst_55 = arith.constant 1.280000e+02 : f32
    %96 = vector.broadcast %cst_55 : f32 to vector<16x1xf32>
    %97 = arith.divf %95, %96 : vector<16x1xf32>
    %98 = vector.broadcast %90 : vector<16x1xf32> to vector<16x128xf32>
    %99 = arith.subf %84, %98 : vector<16x128xf32>
    %cst_56 = arith.constant 9.99999974E-6 : f32
    %100 = vector.broadcast %cst_56 : f32 to vector<16x1xf32>
    %101 = arith.addf %97, %100 : vector<16x1xf32>
    %102 = math.rsqrt %101 : vector<16x1xf32>
    %103 = vector.broadcast %102 : vector<16x1xf32> to vector<16x128xf32>
    %104 = arith.mulf %99, %103 : vector<16x128xf32>
    %105 = vector.broadcast %85 : vector<1x128xf32> to vector<16x128xf32>
    %106 = arith.mulf %104, %105 : vector<16x128xf32>
    %107 = vector.broadcast %86 : vector<1x128xf32> to vector<16x128xf32>
    %108 = arith.addf %106, %107 : vector<16x128xf32>
    %c0_57 = arith.constant 0 : index
    %c0_58 = arith.constant 0 : index
    %109 = vector.load %arg18[%c0_57, %c0_58] : memref<16x128xf32, #tpu.memory_space<vmem>>, vector<16x128xf32>
    tpu.vector_store %arg18[%c0_57, %c0_58], %108 {strides = array<i32>} : memref<16x128xf32, #tpu.memory_space<vmem>>, vector<16x128xf32>,
    return
  }
  func.func @transform_0(%arg0: i32) -> (i32, i32) {
    %c0_i32 = arith.constant 0 : i32
    %c0_i32_0 = arith.constant 0 : i32
    return %arg0, %c0_i32 : i32, i32
  }
  func.func @transform_1(%arg0: i32) -> (i32, i32) {
    %c0_i32 = arith.constant 0 : i32
    %c0_i32_0 = arith.constant 0 : i32
    %c0_i32_1 = arith.constant 0 : i32
    return %c0_i32, %c0_i32_0 : i32, i32
  }
  func.func @transform_2(%arg0: i32) -> (i32, i32) {
    %c0_i32 = arith.constant 0 : i32
    %c0_i32_0 = arith.constant 0 : i32
    %c0_i32_1 = arith.constant 0 : i32
    return %c0_i32, %c0_i32_0 : i32, i32
  }
  func.func @transform_3(%arg0: i32) -> (i32, i32) {
    %c0_i32 = arith.constant 0 : i32
    %c0_i32_0 = arith.constant 0 : i32
    %c0_i32_1 = arith.constant 0 : i32
    return %c0_i32, %c0_i32_0 : i32, i32
  }
  func.func @transform_4(%arg0: i32) -> (i32, i32) {
    %c0_i32 = arith.constant 0 : i32
    %c0_i32_0 = arith.constant 0 : i32
    %c0_i32_1 = arith.constant 0 : i32
    return %c0_i32, %c0_i32_0 : i32, i32
  }
  func.func @transform_5(%arg0: i32) -> (i32, i32) {
    %c0_i32 = arith.constant 0 : i32
    %c0_i32_0 = arith.constant 0 : i32
    %c0_i32_1 = arith.constant 0 : i32
    return %c0_i32, %c0_i32_0 : i32, i32
  }
  func.func @transform_6(%arg0: i32) -> (i32, i32) {
    %c0_i32 = arith.constant 0 : i32
    %c0_i32_0 = arith.constant 0 : i32
    %c0_i32_1 = arith.constant 0 : i32
    return %c0_i32, %c0_i32_0 : i32, i32
  }
  func.func @transform_7(%arg0: i32) -> (i32, i32) {
    %c0_i32 = arith.constant 0 : i32
    %c0_i32_0 = arith.constant 0 : i32
    %c0_i32_1 = arith.constant 0 : i32
    return %c0_i32, %c0_i32_0 : i32, i32
  }
  func.func @transform_8(%arg0: i32) -> (i32, i32) {
    %c0_i32 = arith.constant 0 : i32
    %c0_i32_0 = arith.constant 0 : i32
    %c0_i32_1 = arith.constant 0 : i32
    return %c0_i32, %c0_i32_0 : i32, i32
  }
  func.func @transform_9(%arg0: i32) -> (i32, i32) {
    %c0_i32 = arith.constant 0 : i32
    %c0_i32_0 = arith.constant 0 : i32
    %c0_i32_1 = arith.constant 0 : i32
    return %c0_i32, %c0_i32_0 : i32, i32
  }
  func.func @transform_10(%arg0: i32) -> (i32, i32) {
    %c0_i32 = arith.constant 0 : i32
    %c0_i32_0 = arith.constant 0 : i32
    %c0_i32_1 = arith.constant 0 : i32
    return %c0_i32, %c0_i32_0 : i32, i32
  }
  func.func @transform_11(%arg0: i32) -> (i32, i32) {
    %c0_i32 = arith.constant 0 : i32
    %c0_i32_0 = arith.constant 0 : i32
    %c0_i32_1 = arith.constant 0 : i32
    return %c0_i32, %c0_i32_0 : i32, i32
  }
  func.func @transform_12(%arg0: i32) -> (i32, i32) {
    %c0_i32 = arith.constant 0 : i32
    %c0_i32_0 = arith.constant 0 : i32
    %c0_i32_1 = arith.constant 0 : i32
    return %c0_i32, %c0_i32_0 : i32, i32
  }
  func.func @transform_13(%arg0: i32) -> (i32, i32) {
    %c0_i32 = arith.constant 0 : i32
    %c0_i32_0 = arith.constant 0 : i32
    %c0_i32_1 = arith.constant 0 : i32
    return %c0_i32, %c0_i32_0 : i32, i32
  }
  func.func @transform_14(%arg0: i32) -> (i32, i32) {
    %c0_i32 = arith.constant 0 : i32
    %c0_i32_0 = arith.constant 0 : i32
    %c0_i32_1 = arith.constant 0 : i32
    return %c0_i32, %c0_i32_0 : i32, i32
  }
  func.func @transform_15(%arg0: i32) -> (i32, i32) {
    %c0_i32 = arith.constant 0 : i32
    %c0_i32_0 = arith.constant 0 : i32
    %c0_i32_1 = arith.constant 0 : i32
    return %c0_i32, %c0_i32_0 : i32, i32
  }
  func.func @transform_16(%arg0: i32) -> (i32, i32) {
    %c0_i32 = arith.constant 0 : i32
    %c0_i32_0 = arith.constant 0 : i32
    %c0_i32_1 = arith.constant 0 : i32
    return %c0_i32, %c0_i32_0 : i32, i32
  }
  func.func @transform_17(%arg0: i32) -> (i32, i32) {
    %c0_i32 = arith.constant 0 : i32
    %c0_i32_0 = arith.constant 0 : i32
    return %arg0, %c0_i32 : i32, i32
  }
}

</mosaic_0001>

<llo_original>
// kernel: tpu_custom_call.1
$region0: #{tpu_custom_call.1}
  #allocation0 [shape = 'u32[]', space=smem, size = 0x4, offset = 0x4, fixed_abs, tag = 'smem constant byte address 0x4 - core index']
  #allocation1 [shape = 'u32[72,128]{1,0:T(1,128)}', space=vmem, size = 0x9000, scoped, tag = 'internal scratch']
  %s0 = inlined_call_operand.hbm [shape: f32[8,128], index: 0, kind: input, shape index: {}]
  %s1 = inlined_call_operand.hbm [shape: f32[8,128], index: 1, kind: output, shape index: {}]
  %s2 = sld [smem:[#allocation0]]
  $region41: #{tpu_custom_call.1} parent=0
    _
  %s4 = ssub.s32 1, %s2
  %s5 = scalar_select 0, %s4, %s2
  $region1: #{tpu_custom_call.1} parent=0
    #allocation2 [shape = 'u8[4096]{0}', space=vmem, size = 0x1000, scoped, tag = 'input window, operand 0, single buffered']
    #allocation3 [shape = 's32[2]{0}', space=sflag, size = 0x8, scoped, tag = 'scoped memory for tpu_custom_call.1']
    #allocation4 [shape = 's32[2]{0}', space=sflag, size = 0x8, scoped, tag = 'scoped memory for tpu_custom_call.1']
    #allocation5 [shape = 'u8[4096]{0}', space=vmem, size = 0x1000, scoped, tag = 'output window, operand 0, single buffered']
    %6 = vsyncpa [#allocation3], 0
    %7 = vsyncpa [#allocation4], 0
    loop: start=0, step=1, limit=4
    $region2: #{tpu_custom_call.1} parent=1 // loop_pre_header
      _
    $region3: #{tpu_custom_call.1} parent=1 // loop_header
      %s9 = sphi 0, %s13
      %p10 = scmp.ge.s32.totalorder %s9, 4
      %s17 = sphi 0, %s17
      %s19 = sphi 0, %s17
      %s20 = sphi 0, %s19
      %s34 = sphi 0, %s20
      %s38 = sphi 0, %s38
      %s40 = sphi 0, %s38
      %s41 = sphi 0, %s40
      %s55 = sphi 0, %s41
    $region4: #{tpu_custom_call.1} parent=1 // loop_header_branch
      %12 = sbr.rel (%p10) target = $region8
    $region5: #{tpu_custom_call.1} parent=1 // loop_body
      %s14 = ssub.s32 %s9, 1
      %s15 = ssub.s32 %s9, 2
      %s16 = sadd.s32 %s9, 1
      %s18 = sadd.s32 %s17, 1
      %p21 = scmp.eq.s32.totalorder %s9, 1
      %p22 = scmp.ne.s32.totalorder %s17, %s19
      %p23 = scmp.eq.s32.totalorder %s9, 0
      %p24 = por %p22, %p23
      %p25 = scmp.ne.s32.totalorder %s17, %s19
      %p26 = scmp.eq.s32.totalorder %s14, 1
      %p27 = por %p25, %p26
      %p28 = scmp.ne.s32.totalorder %s19, %s20
      %p29 = scmp.eq.s32.totalorder %s14, 0
      %p30 = por %p28, %p29
      %p31 = scmp.ne.s32.totalorder %s19, %s20
      %p32 = scmp.eq.s32.totalorder %s15, 1
      %p33 = por %p31, %p32
      %p35 = scmp.ne.s32.totalorder %s20, %s34
      %p36 = scmp.eq.s32.totalorder %s15, 0
      %p37 = por %p35, %p36
      %s39 = sadd.s32 %s38, 1
      %p42 = scmp.eq.s32.totalorder %s9, 1
      %p43 = scmp.ne.s32.totalorder %s38, %s40
      %p44 = scmp.eq.s32.totalorder %s9, 0
      %p45 = por %p43, %p44
      %p46 = scmp.ne.s32.totalorder %s38, %s40
      %p47 = scmp.eq.s32.totalorder %s14, 1
      %p48 = por %p46, %p47
      %p49 = scmp.ne.s32.totalorder %s40, %s41
      %p50 = scmp.eq.s32.totalorder %s14, 0
      %p51 = por %p49, %p50
      %p52 = scmp.ne.s32.totalorder %s40, %s41
      %p53 = scmp.eq.s32.totalorder %s15, 1
      %p54 = por %p52, %p53
      %p56 = scmp.ne.s32.totalorder %s41, %s55
      %p57 = scmp.eq.s32.totalorder %s15, 0
      %p58 = por %p56, %p57
      %p59 = scmp.le.s32.totalorder 1, %s9
      %p60 = scmp.lt.s32.totalorder %s9, 3
      %p61 = pnand %p59, %p60
      %p62 = pneg %p61
      // Predicated region
      $region9: #{tpu_custom_call.1} parent=5 // pred_check
        _
      $region10: #{tpu_custom_call.1} parent=5 // pred_check_branch
        %64 = sbr.rel (%p61) target = $region12
      $region11: #{tpu_custom_call.1} parent=5 // pred_region
        %s65 = ssub.s32 %s9, 1
        // Predicated region
        $region13: #{tpu_custom_call.1} parent=11 // pred_check
          %p66 = pneg %p30
        $region14: #{tpu_custom_call.1} parent=11 // pred_check_branch
          %68 = sbr.rel (%p66) target = $region16
        $region15: #{tpu_custom_call.1} parent=11 // pred_region
          %70 = vsyncadd [#allocation3], 0
          %s72 = sshll.u32 %s0, 4
          %s73 = int_to_ptr.hbm [resolvable:$true] %s72
          %s74 = sshll.u32 [#allocation2], 4
          %s75 = int_to_ptr.vmem [resolvable:$true] %s74
          %77 = dma.hbm_to_vmem [thread:$0]  %s73, 128, %s75, [#allocation3]
        $region16: #{tpu_custom_call.1} parent=11 // pred_fallthru
          _
      $region12: #{tpu_custom_call.1} parent=5 // pred_fallthru
        _
      %p78 = scmp.lt.s32.totalorder %s9, 2
      // Predicated region
      $region17: #{tpu_custom_call.1} parent=5 // pred_check
        %p79 = pneg %p78
      $region18: #{tpu_custom_call.1} parent=5 // pred_check_branch
        %81 = sbr.rel (%p79) target = $region20
      $region19: #{tpu_custom_call.1} parent=5 // pred_region
        _
      $region20: #{tpu_custom_call.1} parent=5 // pred_fallthru
        _
      %p82 = scmp.le.s32.totalorder 1, %s9
      %p83 = scmp.lt.s32.totalorder %s9, 3
      %p84 = pnand %p82, %p83
      %p85 = pneg %p84
      // Predicated region
      $region21: #{tpu_custom_call.1} parent=5 // pred_check
        _
      $region22: #{tpu_custom_call.1} parent=5 // pred_check_branch
        %87 = sbr.rel (%p84) target = $region24
      $region23: #{tpu_custom_call.1} parent=5 // pred_region
        %s88 = ssub.s32 %s9, 1
        // Predicated region
        $region25: #{tpu_custom_call.1} parent=23 // pred_check
          %p89 = pneg %p30
        $region26: #{tpu_custom_call.1} parent=23 // pred_check_branch
          %91 = sbr.rel (%p89) target = $region28
        $region27: #{tpu_custom_call.1} parent=23 // pred_region
          %93 = dma.done [#allocation3], 128
        $region28: #{tpu_custom_call.1} parent=23 // pred_fallthru
          _
        %p94 = pneg %p30
        %p95 = pneg %p27
        %p96 = pneg %p51
        %p97 = pneg %p48
        %v98 = vld [vmem:[#allocation2] sm:$0xff]
        %v99 = vadd.f32 %v98, 1.0
        %100 = vst [vmem:[#allocation5] sm:$0xff] %v99
        // Predicated region
        $region29: #{tpu_custom_call.1} parent=23 // pred_check
          %p101 = pneg %p48
        $region30: #{tpu_custom_call.1} parent=23 // pred_check_branch
          %103 = sbr.rel (%p101) target = $region32
        $region31: #{tpu_custom_call.1} parent=23 // pred_region
          %105 = vsyncadd [#allocation4], 0
          %s107 = sshll.u32 [#allocation5], 4
          %s108 = int_to_ptr.vmem [resolvable:$true] %s107
          %s109 = sshll.u32 %s1, 4
          %s110 = int_to_ptr.hbm [resolvable:$true] %s109
          %112 = dma.vmem_to_hbm [thread:$0]  %s108, 128, %s110, [#allocation4]
        $region32: #{tpu_custom_call.1} parent=23 // pred_fallthru
          _
        // Predicated region
        $region33: #{tpu_custom_call.1} parent=23 // pred_check
          %p113 = pneg %p48
        $region34: #{tpu_custom_call.1} parent=23 // pred_check_branch
          %115 = sbr.rel (%p113) target = $region36
        $region35: #{tpu_custom_call.1} parent=23 // pred_region
          %117 = dma.done [#allocation4], 128
        $region36: #{tpu_custom_call.1} parent=23 // pred_fallthru
          _
      $region24: #{tpu_custom_call.1} parent=5 // pred_fallthru
        _
      %p118 = scmp.le.s32.totalorder 2, %s9
      // Predicated region
      $region37: #{tpu_custom_call.1} parent=5 // pred_check
        %p119 = pneg %p118
      $region38: #{tpu_custom_call.1} parent=5 // pred_check_branch
        %121 = sbr.rel (%p119) target = $region40
      $region39: #{tpu_custom_call.1} parent=5 // pred_region
        %s122 = ssub.s32 %s9, 2
      $region40: #{tpu_custom_call.1} parent=5 // pred_fallthru
        _
    $region6: #{tpu_custom_call.1} parent=1 // loop_footer
      %s13 = sadd.s32 1, %s9
    $region7: #{tpu_custom_call.1} parent=1 // loop_footer_branch
      %8 = sbr.rel target = $region3
    $region8: #{tpu_custom_call.1} parent=1 // loop_exit
      _
    %123 = vsyncpa [#allocation3], 1
    %s124 = scalar_lea.sflag [#allocation3], 1
    %125 = vsyncpa %s124, 1
    %126 = vsyncpa [#allocation4], 1
    %s127 = scalar_lea.sflag [#allocation4], 1
    %128 = vsyncpa %s127, 1

// kernel: tpu_custom_call.1
$region0: #{tpu_custom_call.1}
  #allocation0 [shape = 'u32[]', space=smem, size = 0x4, offset = 0x4, fixed_abs, tag = 'smem constant byte address 0x4 - core index']
  #allocation1 [shape = 'u32[72,128]{1,0:T(1,128)}', space=vmem, size = 0x9000, scoped, tag = 'internal scratch']
  %s0 = inlined_call_operand.hbm [shape: bf16[32,128], index: 0, kind: input, shape index: {}]
  %s1 = inlined_call_operand.vmem [shape: bf16[128,64], index: 1, kind: input, shape index: {}]
  %s2 = inlined_call_operand.hbm [shape: f32[1,64], index: 2, kind: input, shape index: {}]
  %s3 = inlined_call_operand.vmem [shape: f32[1,64], index: 3, kind: input, shape index: {}]
  %s4 = inlined_call_operand.vmem [shape: f32[1,64], index: 4, kind: input, shape index: {}]
  %s5 = inlined_call_operand.vmem [shape: bf16[64,128], index: 5, kind: input, shape index: {}]
  %s6 = inlined_call_operand.vmem [shape: f32[1,128], index: 6, kind: input, shape index: {}]
  %s7 = inlined_call_operand.vmem [shape: bf16[128,64], index: 7, kind: input, shape index: {}]
  %s8 = inlined_call_operand.vmem [shape: f32[1,64], index: 8, kind: input, shape index: {}]
  %s9 = inlined_call_operand.vmem [shape: bf16[64,128], index: 9, kind: input, shape index: {}]
  %s10 = inlined_call_operand.vmem [shape: f32[1,128], index: 10, kind: input, shape index: {}]
  %s11 = inlined_call_operand.vmem [shape: bf16[128,128], index: 11, kind: input, shape index: {}]
  %s12 = inlined_call_operand.vmem [shape: f32[1,128], index: 12, kind: input, shape index: {}]
  %s13 = inlined_call_operand.vmem [shape: bf16[64,128], index: 13, kind: input, shape index: {}]
  %s14 = inlined_call_operand.vmem [shape: f32[1,128], index: 14, kind: input, shape index: {}]
  %s15 = inlined_call_operand.vmem [shape: f32[1,128], index: 15, kind: input, shape index: {}]
  %s16 = inlined_call_operand.vmem [shape: f32[1,128], index: 16, kind: input, shape index: {}]
  %s17 = inlined_call_operand.hbm [shape: f32[32,128], index: 17, kind: output, shape index: {}]
  %s18 = sld [smem:[#allocation0]]
  $region109: #{tpu_custom_call.1} parent=0
    _
  %s20 = ssub.s32 1, %s18
  %s21 = scalar_select 0, %s20, %s18
  $region1: #{tpu_custom_call.1} parent=0
    #allocation2 [shape = 'u8[8192]{0}', space=vmem, size = 0x2000, scoped, tag = 'input window, operand 0']
    #allocation3 [shape = 's32[2]{0}', space=sflag, size = 0x8, scoped, tag = 'scoped memory for tpu_custom_call.1']
    #allocation4 [shape = 's32[2]{0}', space=sflag, size = 0x8, scoped, tag = 'scoped memory for tpu_custom_call.1']
    #allocation5 [shape = 'u8[512]{0}', space=vmem, size = 0x400, scoped, tag = 'input window, operand 2, single buffered']
    #allocation6 [shape = 's32[1]{0}', space=sflag, size = 0x4, scoped, tag = 'scoped memory for tpu_custom_call.1']
    #allocation7 [shape = 'u8[16384]{0}', space=vmem, size = 0x4000, scoped, tag = 'output window, operand 0']
    %22 = vsyncpa [#allocation3], 0
    %s23 = scalar_lea.sflag [#allocation3], 1
    %24 = vsyncpa %s23, 0
    %25 = vsyncpa [#allocation6], 0
    %26 = vsyncpa [#allocation4], 0
    %s27 = scalar_lea.sflag [#allocation4], 1
    %28 = vsyncpa %s27, 0
    loop: start=0, step=1, limit=4
    $region2: #{tpu_custom_call.1} parent=1 // loop_pre_header
      _
    $region3: #{tpu_custom_call.1} parent=1 // loop_header
      %s30 = sphi 0, %s34
      %p31 = scmp.ge.s32.totalorder %s30, 4
      %s40 = sphi 0, %s42
      %s43 = sphi 0, %s40
      %s44 = sphi 0, %s43
      %s60 = sphi 0, %s44
      %s64 = sphi 0, %s64
      %s66 = sphi 0, %s64
      %s67 = sphi 0, %s66
      %s81 = sphi 0, %s67
      %s85 = sphi 0, %s85
      %s87 = sphi 0, %s85
      %s88 = sphi 0, %s87
      %s102 = sphi 0, %s88
      %s106 = sphi 0, %s106
      %s108 = sphi 0, %s106
      %s109 = sphi 0, %s108
      %s123 = sphi 0, %s109
      %s127 = sphi 0, %s127
      %s129 = sphi 0, %s127
      %s130 = sphi 0, %s129
      %s144 = sphi 0, %s130
      %s148 = sphi 0, %s148
      %s150 = sphi 0, %s148
      %s151 = sphi 0, %s150
      %s165 = sphi 0, %s151
      %s169 = sphi 0, %s169
      %s171 = sphi 0, %s169
      %s172 = sphi 0, %s171
      %s186 = sphi 0, %s172
      %s190 = sphi 0, %s190
      %s192 = sphi 0, %s190
      %s193 = sphi 0, %s192
      %s207 = sphi 0, %s193
      %s211 = sphi 0, %s211
      %s213 = sphi 0, %s211
      %s214 = sphi 0, %s213
      %s228 = sphi 0, %s214
      %s232 = sphi 0, %s232
      %s234 = sphi 0, %s232
      %s235 = sphi 0, %s234
      %s249 = sphi 0, %s235
      %s253 = sphi 0, %s253
      %s255 = sphi 0, %s253
      %s256 = sphi 0, %s255
      %s270 = sphi 0, %s256
      %s274 = sphi 0, %s274
      %s276 = sphi 0, %s274
      %s277 = sphi 0, %s276
      %s291 = sphi 0, %s277
      %s295 = sphi 0, %s295
      %s297 = sphi 0, %s295
      %s298 = sphi 0, %s297
      %s312 = sphi 0, %s298
      %s316 = sphi 0, %s316
      %s318 = sphi 0, %s316
      %s319 = sphi 0, %s318
      %s333 = sphi 0, %s319
      %s337 = sphi 0, %s337
      %s339 = sphi 0, %s337
      %s340 = sphi 0, %s339
      %s354 = sphi 0, %s340
      %s358 = sphi 0, %s358
      %s360 = sphi 0, %s358
      %s361 = sphi 0, %s360
      %s375 = sphi 0, %s361
      %s379 = sphi 0, %s379
      %s381 = sphi 0, %s379
      %s382 = sphi 0, %s381
      %s396 = sphi 0, %s382
      %s402 = sphi 0, %s404
      %s405 = sphi 0, %s402
      %s406 = sphi 0, %s405
      %s422 = sphi 0, %s406
    $region4: #{tpu_custom_call.1} parent=1 // loop_header_branch
      %33 = sbr.rel (%p31) target = $region8
    $region5: #{tpu_custom_call.1} parent=1 // loop_body
      %s35 = ssub.s32 %s30, 1
      %s36 = ssub.s32 %s30, 2
      %s37 = sadd.s32 %s30, 1
      %s38 = ssub.s32 %s30, %s37
      %p39 = scmp.eq.s32.totalorder %s38, 0
      %s41 = sadd.s32 %s40, 1
      %s42 = scalar_select %p39, %s40, %s41
      %p45 = pneg %p39
      %p46 = scmp.eq.s32.totalorder %s30, 1
      %p47 = por %p45, %p46
      %p48 = scmp.ne.s32.totalorder %s40, %s43
      %p49 = scmp.eq.s32.totalorder %s30, 0
      %p50 = por %p48, %p49
      %p51 = scmp.ne.s32.totalorder %s40, %s43
      %p52 = scmp.eq.s32.totalorder %s35, 1
      %p53 = por %p51, %p52
      %p54 = scmp.ne.s32.totalorder %s43, %s44
      %p55 = scmp.eq.s32.totalorder %s35, 0
      %p56 = por %p54, %p55
      %p57 = scmp.ne.s32.totalorder %s43, %s44
      %p58 = scmp.eq.s32.totalorder %s36, 1
      %p59 = por %p57, %p58
      %p61 = scmp.ne.s32.totalorder %s44, %s60
      %p62 = scmp.eq.s32.totalorder %s36, 0
      %p63 = por %p61, %p62
      %s65 = sadd.s32 %s64, 1
      %p68 = scmp.eq.s32.totalorder %s30, 1
      %p69 = scmp.ne.s32.totalorder %s64, %s66
      %p70 = scmp.eq.s32.totalorder %s30, 0
      %p71 = por %p69, %p70
      %p72 = scmp.ne.s32.totalorder %s64, %s66
      %p73 = scmp.eq.s32.totalorder %s35, 1
      %p74 = por %p72, %p73
      %p75 = scmp.ne.s32.totalorder %s66, %s67
      %p76 = scmp.eq.s32.totalorder %s35, 0
      %p77 = por %p75, %p76
      %p78 = scmp.ne.s32.totalorder %s66, %s67
      %p79 = scmp.eq.s32.totalorder %s36, 1
      %p80 = por %p78, %p79
      %p82 = scmp.ne.s32.totalorder %s67, %s81
      %p83 = scmp.eq.s32.totalorder %s36, 0
      %p84 = por %p82, %p83
      %s86 = sadd.s32 %s85, 1
      %p89 = scmp.eq.s32.totalorder %s30, 1
      %p90 = scmp.ne.s32.totalorder %s85, %s87
      %p91 = scmp.eq.s32.totalorder %s30, 0
      %p92 = por %p90, %p91
      %p93 = scmp.ne.s32.totalorder %s85, %s87
      %p94 = scmp.eq.s32.totalorder %s35, 1
      %p95 = por %p93, %p94
      %p96 = scmp.ne.s32.totalorder %s87, %s88
      %p97 = scmp.eq.s32.totalorder %s35, 0
      %p98 = por %p96, %p97
      %p99 = scmp.ne.s32.totalorder %s87, %s88
      %p100 = scmp.eq.s32.totalorder %s36, 1
      %p101 = por %p99, %p100
      %p103 = scmp.ne.s32.totalorder %s88, %s102
      %p104 = scmp.eq.s32.totalorder %s36, 0
      %p105 = por %p103, %p104
      %s107 = sadd.s32 %s106, 1
      %p110 = scmp.eq.s32.totalorder %s30, 1
      %p111 = scmp.ne.s32.totalorder %s106, %s108
      %p112 = scmp.eq.s32.totalorder %s30, 0
      %p113 = por %p111, %p112
      %p114 = scmp.ne.s32.totalorder %s106, %s108
      %p115 = scmp.eq.s32.totalorder %s35, 1
      %p116 = por %p114, %p115
      %p117 = scmp.ne.s32.totalorder %s108, %s109
      %p118 = scmp.eq.s32.totalorder %s35, 0
      %p119 = por %p117, %p118
      %p120 = scmp.ne.s32.totalorder %s108, %s109
      %p121 = scmp.eq.s32.totalorder %s36, 1
      %p122 = por %p120, %p121
      %p124 = scmp.ne.s32.totalorder %s109, %s123
      %p125 = scmp.eq.s32.totalorder %s36, 0
      %p126 = por %p124, %p125
      %s128 = sadd.s32 %s127, 1
      %p131 = scmp.eq.s32.totalorder %s30, 1
      %p132 = scmp.ne.s32.totalorder %s127, %s129
      %p133 = scmp.eq.s32.totalorder %s30, 0
      %p134 = por %p132, %p133
      %p135 = scmp.ne.s32.totalorder %s127, %s129
      %p136 = scmp.eq.s32.totalorder %s35, 1
      %p137 = por %p135, %p136
      %p138 = scmp.ne.s32.totalorder %s129, %s130
      %p139 = scmp.eq.s32.totalorder %s35, 0
      %p140 = por %p138, %p139
      %p141 = scmp.ne.s32.totalorder %s129, %s130
      %p142 = scmp.eq.s32.totalorder %s36, 1
      %p143 = por %p141, %p142
      %p145 = scmp.ne.s32.totalorder %s130, %s144
      %p146 = scmp.eq.s32.totalorder %s36, 0
      %p147 = por %p145, %p146
      %s149 = sadd.s32 %s148, 1
      %p152 = scmp.eq.s32.totalorder %s30, 1
      %p153 = scmp.ne.s32.totalorder %s148, %s150
      %p154 = scmp.eq.s32.totalorder %s30, 0
      %p155 = por %p153, %p154
      %p156 = scmp.ne.s32.totalorder %s148, %s150
      %p157 = scmp.eq.s32.totalorder %s35, 1
      %p158 = por %p156, %p157
      %p159 = scmp.ne.s32.totalorder %s150, %s151
      %p160 = scmp.eq.s32.totalorder %s35, 0
      %p161 = por %p159, %p160
      %p162 = scmp.ne.s32.totalorder %s150, %s151
      %p163 = scmp.eq.s32.totalorder %s36, 1
      %p164 = por %p162, %p163
      %p166 = scmp.ne.s32.totalorder %s151, %s165
      %p167 = scmp.eq.s32.totalorder %s36, 0
      %p168 = por %p166, %p167
      %s170 = sadd.s32 %s169, 1
      %p173 = scmp.eq.s32.totalorder %s30, 1
      %p174 = scmp.ne.s32.totalorder %s169, %s171
      %p175 = scmp.eq.s32.totalorder %s30, 0
      %p176 = por %p174, %p175
      %p177 = scmp.ne.s32.totalorder %s169, %s171
      %p178 = scmp.eq.s32.totalorder %s35, 1
      %p179 = por %p177, %p178
      %p180 = scmp.ne.s32.totalorder %s171, %s172
      %p181 = scmp.eq.s32.totalorder %s35, 0
      %p182 = por %p180, %p181
      %p183 = scmp.ne.s32.totalorder %s171, %s172
      %p184 = scmp.eq.s32.totalorder %s36, 1
      %p185 = por %p183, %p184
      %p187 = scmp.ne.s32.totalorder %s172, %s186
      %p188 = scmp.eq.s32.totalorder %s36, 0
      %p189 = por %p187, %p188
      %s191 = sadd.s32 %s190, 1
      %p194 = scmp.eq.s32.totalorder %s30, 1
      %p195 = scmp.ne.s32.totalorder %s190, %s192
      %p196 = scmp.eq.s32.totalorder %s30, 0
      %p197 = por %p195, %p196
      %p198 = scmp.ne.s32.totalorder %s190, %s192
      %p199 = scmp.eq.s32.totalorder %s35, 1
      %p200 = por %p198, %p199
      %p201 = scmp.ne.s32.totalorder %s192, %s193
      %p202 = scmp.eq.s32.totalorder %s35, 0
      %p203 = por %p201, %p202
      %p204 = scmp.ne.s32.totalorder %s192, %s193
      %p205 = scmp.eq.s32.totalorder %s36, 1
      %p206 = por %p204, %p205
      %p208 = scmp.ne.s32.totalorder %s193, %s207
      %p209 = scmp.eq.s32.totalorder %s36, 0
      %p210 = por %p208, %p209
      %s212 = sadd.s32 %s211, 1
      %p215 = scmp.eq.s32.totalorder %s30, 1
      %p216 = scmp.ne.s32.totalorder %s211, %s213
      %p217 = scmp.eq.s32.totalorder %s30, 0
      %p218 = por %p216, %p217
      %p219 = scmp.ne.s32.totalorder %s211, %s213
      %p220 = scmp.eq.s32.totalorder %s35, 1
      %p221 = por %p219, %p220
      %p222 = scmp.ne.s32.totalorder %s213, %s214
      %p223 = scmp.eq.s32.totalorder %s35, 0
      %p224 = por %p222, %p223
      %p225 = scmp.ne.s32.totalorder %s213, %s214
      %p226 = scmp.eq.s32.totalorder %s36, 1
      %p227 = por %p225, %p226
      %p229 = scmp.ne.s32.totalorder %s214, %s228
      %p230 = scmp.eq.s32.totalorder %s36, 0
      %p231 = por %p229, %p230
      %s233 = sadd.s32 %s232, 1
      %p236 = scmp.eq.s32.totalorder %s30, 1
      %p237 = scmp.ne.s32.totalorder %s232, %s234
      %p238 = scmp.eq.s32.totalorder %s30, 0
      %p239 = por %p237, %p238
      %p240 = scmp.ne.s32.totalorder %s232, %s234
      %p241 = scmp.eq.s32.totalorder %s35, 1
      %p242 = por %p240, %p241
      %p243 = scmp.ne.s32.totalorder %s234, %s235
      %p244 = scmp.eq.s32.totalorder %s35, 0
      %p245 = por %p243, %p244
      %p246 = scmp.ne.s32.totalorder %s234, %s235
      %p247 = scmp.eq.s32.totalorder %s36, 1
      %p248 = por %p246, %p247
      %p250 = scmp.ne.s32.totalorder %s235, %s249
      %p251 = scmp.eq.s32.totalorder %s36, 0
      %p252 = por %p250, %p251
      %s254 = sadd.s32 %s253, 1
      %p257 = scmp.eq.s32.totalorder %s30, 1
      %p258 = scmp.ne.s32.totalorder %s253, %s255
      %p259 = scmp.eq.s32.totalorder %s30, 0
      %p260 = por %p258, %p259
      %p261 = scmp.ne.s32.totalorder %s253, %s255
      %p262 = scmp.eq.s32.totalorder %s35, 1
      %p263 = por %p261, %p262
      %p264 = scmp.ne.s32.totalorder %s255, %s256
      %p265 = scmp.eq.s32.totalorder %s35, 0
      %p266 = por %p264, %p265
      %p267 = scmp.ne.s32.totalorder %s255, %s256
      %p268 = scmp.eq.s32.totalorder %s36, 1
      %p269 = por %p267, %p268
      %p271 = scmp.ne.s32.totalorder %s256, %s270
      %p272 = scmp.eq.s32.totalorder %s36, 0
      %p273 = por %p271, %p272
      %s275 = sadd.s32 %s274, 1
      %p278 = scmp.eq.s32.totalorder %s30, 1
      %p279 = scmp.ne.s32.totalorder %s274, %s276
      %p280 = scmp.eq.s32.totalorder %s30, 0
      %p281 = por %p279, %p280
      %p282 = scmp.ne.s32.totalorder %s274, %s276
      %p283 = scmp.eq.s32.totalorder %s35, 1
      %p284 = por %p282, %p283
      %p285 = scmp.ne.s32.totalorder %s276, %s277
      %p286 = scmp.eq.s32.totalorder %s35, 0
      %p287 = por %p285, %p286
      %p288 = scmp.ne.s32.totalorder %s276, %s277
      %p289 = scmp.eq.s32.totalorder %s36, 1
      %p290 = por %p288, %p289
      %p292 = scmp.ne.s32.totalorder %s277, %s291
      %p293 = scmp.eq.s32.totalorder %s36, 0
      %p294 = por %p292, %p293
      %s296 = sadd.s32 %s295, 1
      %p299 = scmp.eq.s32.totalorder %s30, 1
      %p300 = scmp.ne.s32.totalorder %s295, %s297
      %p301 = scmp.eq.s32.totalorder %s30, 0
      %p302 = por %p300, %p301
      %p303 = scmp.ne.s32.totalorder %s295, %s297
      %p304 = scmp.eq.s32.totalorder %s35, 1
      %p305 = por %p303, %p304
      %p306 = scmp.ne.s32.totalorder %s297, %s298
      %p307 = scmp.eq.s32.totalorder %s35, 0
      %p308 = por %p306, %p307
      %p309 = scmp.ne.s32.totalorder %s297, %s298
      %p310 = scmp.eq.s32.totalorder %s36, 1
      %p311 = por %p309, %p310
      %p313 = scmp.ne.s32.totalorder %s298, %s312
      %p314 = scmp.eq.s32.totalorder %s36, 0
      %p315 = por %p313, %p314
      %s317 = sadd.s32 %s316, 1
      %p320 = scmp.eq.s32.totalorder %s30, 1
      %p321 = scmp.ne.s32.totalorder %s316, %s318
      %p322 = scmp.eq.s32.totalorder %s30, 0
      %p323 = por %p321, %p322
      %p324 = scmp.ne.s32.totalorder %s316, %s318
      %p325 = scmp.eq.s32.totalorder %s35, 1
      %p326 = por %p324, %p325
      %p327 = scmp.ne.s32.totalorder %s318, %s319
      %p328 = scmp.eq.s32.totalorder %s35, 0
      %p329 = por %p327, %p328
      %p330 = scmp.ne.s32.totalorder %s318, %s319
      %p331 = scmp.eq.s32.totalorder %s36, 1
      %p332 = por %p330, %p331
      %p334 = scmp.ne.s32.totalorder %s319, %s333
      %p335 = scmp.eq.s32.totalorder %s36, 0
      %p336 = por %p334, %p335
      %s338 = sadd.s32 %s337, 1
      %p341 = scmp.eq.s32.totalorder %s30, 1
      %p342 = scmp.ne.s32.totalorder %s337, %s339
      %p343 = scmp.eq.s32.totalorder %s30, 0
      %p344 = por %p342, %p343
      %p345 = scmp.ne.s32.totalorder %s337, %s339
      %p346 = scmp.eq.s32.totalorder %s35, 1
      %p347 = por %p345, %p346
      %p348 = scmp.ne.s32.totalorder %s339, %s340
      %p349 = scmp.eq.s32.totalorder %s35, 0
      %p350 = por %p348, %p349
      %p351 = scmp.ne.s32.totalorder %s339, %s340
      %p352 = scmp.eq.s32.totalorder %s36, 1
      %p353 = por %p351, %p352
      %p355 = scmp.ne.s32.totalorder %s340, %s354
      %p356 = scmp.eq.s32.totalorder %s36, 0
      %p357 = por %p355, %p356
      %s359 = sadd.s32 %s358, 1
      %p362 = scmp.eq.s32.totalorder %s30, 1
      %p363 = scmp.ne.s32.totalorder %s358, %s360
      %p364 = scmp.eq.s32.totalorder %s30, 0
      %p365 = por %p363, %p364
      %p366 = scmp.ne.s32.totalorder %s358, %s360
      %p367 = scmp.eq.s32.totalorder %s35, 1
      %p368 = por %p366, %p367
      %p369 = scmp.ne.s32.totalorder %s360, %s361
      %p370 = scmp.eq.s32.totalorder %s35, 0
      %p371 = por %p369, %p370
      %p372 = scmp.ne.s32.totalorder %s360, %s361
      %p373 = scmp.eq.s32.totalorder %s36, 1
      %p374 = por %p372, %p373
      %p376 = scmp.ne.s32.totalorder %s361, %s375
      %p377 = scmp.eq.s32.totalorder %s36, 0
      %p378 = por %p376, %p377
      %s380 = sadd.s32 %s379, 1
      %p383 = scmp.eq.s32.totalorder %s30, 1
      %p384 = scmp.ne.s32.totalorder %s379, %s381
      %p385 = scmp.eq.s32.totalorder %s30, 0
      %p386 = por %p384, %p385
      %p387 = scmp.ne.s32.totalorder %s379, %s381
      %p388 = scmp.eq.s32.totalorder %s35, 1
      %p389 = por %p387, %p388
      %p390 = scmp.ne.s32.totalorder %s381, %s382
      %p391 = scmp.eq.s32.totalorder %s35, 0
      %p392 = por %p390, %p391
      %p393 = scmp.ne.s32.totalorder %s381, %s382
      %p394 = scmp.eq.s32.totalorder %s36, 1
      %p395 = por %p393, %p394
      %p397 = scmp.ne.s32.totalorder %s382, %s396
      %p398 = scmp.eq.s32.totalorder %s36, 0
      %p399 = por %p397, %p398
      %s400 = ssub.s32 %s30, %s37
      %p401 = scmp.eq.s32.totalorder %s400, 0
      %s403 = sadd.s32 %s402, 1
      %s404 = scalar_select %p401, %s402, %s403
      %p407 = pneg %p401
      %p408 = scmp.eq.s32.totalorder %s30, 1
      %p409 = por %p407, %p408
      %p410 = scmp.ne.s32.totalorder %s402, %s405
      %p411 = scmp.eq.s32.totalorder %s30, 0
      %p412 = por %p410, %p411
      %p413 = scmp.ne.s32.totalorder %s402, %s405
      %p414 = scmp.eq.s32.totalorder %s35, 1
      %p415 = por %p413, %p414
      %p416 = scmp.ne.s32.totalorder %s405, %s406
      %p417 = scmp.eq.s32.totalorder %s35, 0
      %p418 = por %p416, %p417
      %p419 = scmp.ne.s32.totalorder %s405, %s406
      %p420 = scmp.eq.s32.totalorder %s36, 1
      %p421 = por %p419, %p420
      %p423 = scmp.ne.s32.totalorder %s406, %s422
      %p424 = scmp.eq.s32.totalorder %s36, 0
      %p425 = por %p423, %p424
      %p426 = scmp.le.s32.totalorder 1, %s30
      %p427 = scmp.lt.s32.totalorder %s30, 3
      %p428 = pnand %p426, %p427
      %p429 = pneg %p428
      // Predicated region
      $region9: #{tpu_custom_call.1} parent=5 // pred_check
        _
      $region10: #{tpu_custom_call.1} parent=5 // pred_check_branch
        %431 = sbr.rel (%p428) target = $region12
      $region11: #{tpu_custom_call.1} parent=5 // pred_region
        %s432 = ssub.s32 %s30, 1
        // Predicated region
        $region13: #{tpu_custom_call.1} parent=11 // pred_check
          %p433 = pneg %p77
        $region14: #{tpu_custom_call.1} parent=11 // pred_check_branch
          %435 = sbr.rel (%p433) target = $region16
        $region15: #{tpu_custom_call.1} parent=11 // pred_region
          _
        $region16: #{tpu_custom_call.1} parent=11 // pred_fallthru
          _
        // Predicated region
        $region17: #{tpu_custom_call.1} parent=11 // pred_check
          %p436 = pneg %p98
        $region18: #{tpu_custom_call.1} parent=11 // pred_check_branch
          %438 = sbr.rel (%p436) target = $region20
        $region19: #{tpu_custom_call.1} parent=11 // pred_region
          %440 = vsyncadd [#allocation6], 0
          %s442 = sshll.u32 %s2, 4
          %s443 = int_to_ptr.hbm [resolvable:$true] %s442
          %s444 = sshll.u32 [#allocation5], 4
          %s445 = int_to_ptr.vmem [resolvable:$true] %s444
          %447 = dma.hbm_to_vmem [thread:$0]  %s443, 16, %s445, [#allocation6]
        $region20: #{tpu_custom_call.1} parent=11 // pred_fallthru
          _
        // Predicated region
        $region21: #{tpu_custom_call.1} parent=11 // pred_check
          %p448 = pneg %p119
        $region22: #{tpu_custom_call.1} parent=11 // pred_check_branch
          %450 = sbr.rel (%p448) target = $region24
        $region23: #{tpu_custom_call.1} parent=11 // pred_region
          _
        $region24: #{tpu_custom_call.1} parent=11 // pred_fallthru
          _
        // Predicated region
        $region25: #{tpu_custom_call.1} parent=11 // pred_check
          %p451 = pneg %p140
        $region26: #{tpu_custom_call.1} parent=11 // pred_check_branch
          %453 = sbr.rel (%p451) target = $region28
        $region27: #{tpu_custom_call.1} parent=11 // pred_region
          _
        $region28: #{tpu_custom_call.1} parent=11 // pred_fallthru
          _
        // Predicated region
        $region29: #{tpu_custom_call.1} parent=11 // pred_check
          %p454 = pneg %p161
        $region30: #{tpu_custom_call.1} parent=11 // pred_check_branch
          %456 = sbr.rel (%p454) target = $region32
        $region31: #{tpu_custom_call.1} parent=11 // pred_region
          _
        $region32: #{tpu_custom_call.1} parent=11 // pred_fallthru
          _
        // Predicated region
        $region33: #{tpu_custom_call.1} parent=11 // pred_check
          %p457 = pneg %p182
        $region34: #{tpu_custom_call.1} parent=11 // pred_check_branch
          %459 = sbr.rel (%p457) target = $region36
        $region35: #{tpu_custom_call.1} parent=11 // pred_region
          _
        $region36: #{tpu_custom_call.1} parent=11 // pred_fallthru
          _
        // Predicated region
        $region37: #{tpu_custom_call.1} parent=11 // pred_check
          %p460 = pneg %p203
        $region38: #{tpu_custom_call.1} parent=11 // pred_check_branch
          %462 = sbr.rel (%p460) target = $region40
        $region39: #{tpu_custom_call.1} parent=11 // pred_region
          _
        $region40: #{tpu_custom_call.1} parent=11 // pred_fallthru
          _
        // Predicated region
        $region41: #{tpu_custom_call.1} parent=11 // pred_check
          %p463 = pneg %p224
        $region42: #{tpu_custom_call.1} parent=11 // pred_check_branch
          %465 = sbr.rel (%p463) target = $region44
        $region43: #{tpu_custom_call.1} parent=11 // pred_region
          _
        $region44: #{tpu_custom_call.1} parent=11 // pred_fallthru
          _
        // Predicated region
        $region45: #{tpu_custom_call.1} parent=11 // pred_check
          %p466 = pneg %p245
        $region46: #{tpu_custom_call.1} parent=11 // pred_check_branch
          %468 = sbr.rel (%p466) target = $region48
        $region47: #{tpu_custom_call.1} parent=11 // pred_region
          _
        $region48: #{tpu_custom_call.1} parent=11 // pred_fallthru
          _
        // Predicated region
        $region49: #{tpu_custom_call.1} parent=11 // pred_check
          %p469 = pneg %p266
        $region50: #{tpu_custom_call.1} parent=11 // pred_check_branch
          %471 = sbr.rel (%p469) target = $region52
        $region51: #{tpu_custom_call.1} parent=11 // pred_region
          _
        $region52: #{tpu_custom_call.1} parent=11 // pred_fallthru
          _
        // Predicated region
        $region53: #{tpu_custom_call.1} parent=11 // pred_check
          %p472 = pneg %p287
        $region54: #{tpu_custom_call.1} parent=11 // pred_check_branch
          %474 = sbr.rel (%p472) target = $region56
        $region55: #{tpu_custom_call.1} parent=11 // pred_region
          _
        $region56: #{tpu_custom_call.1} parent=11 // pred_fallthru
          _
        // Predicated region
        $region57: #{tpu_custom_call.1} parent=11 // pred_check
          %p475 = pneg %p308
        $region58: #{tpu_custom_call.1} parent=11 // pred_check_branch
          %477 = sbr.rel (%p475) target = $region60
        $region59: #{tpu_custom_call.1} parent=11 // pred_region
          _
        $region60: #{tpu_custom_call.1} parent=11 // pred_fallthru
          _
        // Predicated region
        $region61: #{tpu_custom_call.1} parent=11 // pred_check
          %p478 = pneg %p329
        $region62: #{tpu_custom_call.1} parent=11 // pred_check_branch
          %480 = sbr.rel (%p478) target = $region64
        $region63: #{tpu_custom_call.1} parent=11 // pred_region
          _
        $region64: #{tpu_custom_call.1} parent=11 // pred_fallthru
          _
        // Predicated region
        $region65: #{tpu_custom_call.1} parent=11 // pred_check
          %p481 = pneg %p350
        $region66: #{tpu_custom_call.1} parent=11 // pred_check_branch
          %483 = sbr.rel (%p481) target = $region68
        $region67: #{tpu_custom_call.1} parent=11 // pred_region
          _
        $region68: #{tpu_custom_call.1} parent=11 // pred_fallthru
          _
        // Predicated region
        $region69: #{tpu_custom_call.1} parent=11 // pred_check
          %p484 = pneg %p371
        $region70: #{tpu_custom_call.1} parent=11 // pred_check_branch
          %486 = sbr.rel (%p484) target = $region72
        $region71: #{tpu_custom_call.1} parent=11 // pred_region
          _
        $region72: #{tpu_custom_call.1} parent=11 // pred_fallthru
          _
        // Predicated region
        $region73: #{tpu_custom_call.1} parent=11 // pred_check
          %p487 = pneg %p392
        $region74: #{tpu_custom_call.1} parent=11 // pred_check_branch
          %489 = sbr.rel (%p487) target = $region76
        $region75: #{tpu_custom_call.1} parent=11 // pred_region
          _
        $region76: #{tpu_custom_call.1} parent=11 // pred_fallthru
          _
      $region12: #{tpu_custom_call.1} parent=5 // pred_fallthru
        _
      %p490 = scmp.lt.s32.totalorder %s30, 2
      // Predicated region
      $region77: #{tpu_custom_call.1} parent=5 // pred_check
        %p491 = pneg %p490
      $region78: #{tpu_custom_call.1} parent=5 // pred_check_branch
        %493 = sbr.rel (%p491) target = $region80
      $region79: #{tpu_custom_call.1} parent=5 // pred_region
        // Predicated region
        $region81: #{tpu_custom_call.1} parent=79 // pred_check
          %p494 = pneg %p50
        $region82: #{tpu_custom_call.1} parent=79 // pred_check_branch
          %496 = sbr.rel (%p494) target = $region84
        $region83: #{tpu_custom_call.1} parent=79 // pred_region
          %s497 = sand.u32 %s40, 1
          %s498 = scalar_lea.sflag [#allocation3], %s497
          %s499 = sand.u32 %s40, 1
          %s500 = smul.addr %s499, 8
          %s501 = scalar_lea.vmem [#allocation2], %s500
          %s502 = smul.u32 2, %s30
          %504 = vsyncadd %s498, 0
          %s505 = smul.addr %s502, 4
          %s506 = scalar_lea.hbm %s0, %s505
          %s507 = sshll.u32 %s506, 4
          %s508 = int_to_ptr.hbm [resolvable:$true] %s507
          %s509 = sshll.u32 %s501, 4
          %s510 = int_to_ptr.vmem [resolvable:$true] %s509
          %515 = dma.hbm_to_vmem [thread:$0]  %s508, 128, %s510, %s498, 64, 64, 4
        $region84: #{tpu_custom_call.1} parent=79 // pred_fallthru
          _
      $region80: #{tpu_custom_call.1} parent=5 // pred_fallthru
        _
      %p516 = scmp.le.s32.totalorder 1, %s30
      %p517 = scmp.lt.s32.totalorder %s30, 3
      %p518 = pnand %p516, %p517
      %p519 = pneg %p518
      // Predicated region
      $region85: #{tpu_custom_call.1} parent=5 // pred_check
        _
      $region86: #{tpu_custom_call.1} parent=5 // pred_check_branch
        %521 = sbr.rel (%p518) target = $region88
      $region87: #{tpu_custom_call.1} parent=5 // pred_region
        %s522 = ssub.s32 %s30, 1
        %s523 = sand.u32 %s43, 1
        %s524 = scalar_lea.sflag [#allocation3], %s523
        %s525 = sand.u32 %s43, 1
        %s526 = smul.addr %s525, 8
        %s527 = scalar_lea.vmem [#allocation2], %s526
        // Predicated region
        $region89: #{tpu_custom_call.1} parent=87 // pred_check
          %p528 = pneg %p56
        $region90: #{tpu_custom_call.1} parent=87 // pred_check_branch
          %530 = sbr.rel (%p528) target = $region92
        $region91: #{tpu_custom_call.1} parent=87 // pred_region
          %532 = dma.done %s524, 128
        $region92: #{tpu_custom_call.1} parent=87 // pred_fallthru
          _
        // Predicated region
        $region93: #{tpu_custom_call.1} parent=87 // pred_check
          %p533 = pneg %p98
        $region94: #{tpu_custom_call.1} parent=87 // pred_check_branch
          %535 = sbr.rel (%p533) target = $region96
        $region95: #{tpu_custom_call.1} parent=87 // pred_region
          %537 = dma.done [#allocation6], 16
        $region96: #{tpu_custom_call.1} parent=87 // pred_fallthru
          _
        %s538 = sand.u32 %s43, 1
        %s539 = scalar_lea.sflag [#allocation3], %s538
        %s540 = sand.u32 %s43, 1
        %s541 = smul.addr %s540, 8
        %s542 = scalar_lea.vmem [#allocation2], %s541
        %p543 = pneg %p56
        %p544 = pneg %p53
        %p545 = pneg %p77
        %p546 = pneg %p74
        %p547 = pneg %p98
        %p548 = pneg %p95
        %p549 = pneg %p119
        %p550 = pneg %p116
        %p551 = pneg %p140
        %p552 = pneg %p137
        %p553 = pneg %p161
        %p554 = pneg %p158
        %p555 = pneg %p182
        %p556 = pneg %p179
        %p557 = pneg %p203
        %p558 = pneg %p200
        %p559 = pneg %p224
        %p560 = pneg %p221
        %p561 = pneg %p245
        %p562 = pneg %p242
        %p563 = pneg %p266
        %p564 = pneg %p263
        %p565 = pneg %p287
        %p566 = pneg %p284
        %p567 = pneg %p308
        %p568 = pneg %p305
        %p569 = pneg %p329
        %p570 = pneg %p326
        %p571 = pneg %p350
        %p572 = pneg %p347
        %p573 = pneg %p371
        %p574 = pneg %p368
        %p575 = pneg %p392
        %p576 = pneg %p389
        %p577 = pneg %p418
        %p578 = pneg %p415
        %s579 = sand.u32 %s405, 1
        %s580 = scalar_lea.sflag [#allocation4], %s579
        %s581 = sand.u32 %s405, 1
        %s582 = smul.addr %s581, 16
        %s583 = scalar_lea.vmem [#allocation7], %s582
        %s584 = smul.u32 2, %s35
        %s585 = smul.u32 2, %s35
        %v587 = vld [vmem:[%s527] sm:$0xf]
        %v588 = vld [vmem:[%s527 + $0x4] sm:$0xf]
        %v589 = vld [vmem:[%s1] sm:$0xf]
        %v590 = vld [vmem:[%s1 + $0x4] sm:$0xf]
        %v591 = vld [vmem:[%s1 + $0x8] sm:$0xf]
        %v592 = vld [vmem:[%s1 + $0xc] sm:$0xf]
        %v593 = vld [vmem:[%s1 + $0x10] sm:$0xf]
        %v594 = vld [vmem:[%s1 + $0x14] sm:$0xf]
        %v595 = vld [vmem:[%s1 + $0x18] sm:$0xf]
        %v596 = vld [vmem:[%s1 + $0x1c] sm:$0xf]
        %v597 = vld [vmem:[%s1 + $0x20] sm:$0xf]
        %v598 = vld [vmem:[%s1 + $0x24] sm:$0xf]
        %v599 = vld [vmem:[%s1 + $0x28] sm:$0xf]
        %v600 = vld [vmem:[%s1 + $0x2c] sm:$0xf]
        %v601 = vld [vmem:[%s1 + $0x30] sm:$0xf]
        %v602 = vld [vmem:[%s1 + $0x34] sm:$0xf]
        %v603 = vld [vmem:[%s1 + $0x38] sm:$0xf]
        %v604 = vld [vmem:[%s1 + $0x3c] sm:$0xf]
        %v605 = vld [vmem:[#allocation5] sm:$0x1]
        %v607 = vperm.slane %v605, 0
        %v611 = vunpack.c.l.b16 %v587
        %v612 = vunpack.c.l.b16 %v588
        %v613 = vpack.c.b16 %v612, %v611
        %v631 = vunpack.c.l.b16 %v589
        %v632 = vunpack.c.l.b16 %v590
        %v633 = vunpack.c.l.b16 %v591
        %v634 = vunpack.c.l.b16 %v592
        %v635 = vunpack.c.l.b16 %v593
        %v636 = vunpack.c.l.b16 %v594
        %v637 = vunpack.c.l.b16 %v595
        %v638 = vunpack.c.l.b16 %v596
        %v639 = vunpack.c.l.b16 %v597
        %v640 = vunpack.c.l.b16 %v598
        %v641 = vunpack.c.l.b16 %v599
        %v642 = vunpack.c.l.b16 %v600
        %v643 = vunpack.c.l.b16 %v601
        %v644 = vunpack.c.l.b16 %v602
        %v645 = vunpack.c.l.b16 %v603
        %v646 = vunpack.c.l.b16 %v604
        %v647 = vpack.c.b16 %v632, %v631
        %v648 = vpack.c.b16 %v634, %v633
        %v649 = vpack.c.b16 %v636, %v635
        %v650 = vpack.c.b16 %v638, %v637
        %v651 = vpack.c.b16 %v640, %v639
        %v652 = vpack.c.b16 %v642, %v641
        %v653 = vpack.c.b16 %v644, %v643
        %v654 = vpack.c.b16 %v646, %v645
        %663 = vmatpush.bf16.msra.mxu0 %v654
        %664 = vmatpush.bf16.msra.mxu0 %v653
        %665 = vmatpush.bf16.msra.mxu0 %v652
        %666 = vmatpush.bf16.msra.mxu0 %v651
        %667 = vmatpush.bf16.msra.mxu0 %v650
        %668 = vmatpush.bf16.msra.mxu0 %v649
        %669 = vmatpush.bf16.msra.mxu0 %v648
        %670 = vmatpush.bf16.msra.mxu0 %v647
        %671 = vmatmul.bf16.gmra.mxu0 %v613
        %v672 = vpop.f32.mrf.mxu0
        %v673 = vadd.f32 %v607, %v672
        %v674 = vpop.f32.mrf.mxu0
        %v675 = vadd.f32 %v607, %v674
        %676 = vdwg.mxu0
        %v677 = vld [vmem:[%s3] sm:$0x1]
        %v678 = vld [vmem:[%s4] sm:$0x1]
        %vm679 = vcmask 523264
        %v680 = vsel %vm679, %v673, 0.0
        %681 = vadd.xlane.f32.xlu0 %v680
        %v682 = vpop.xlane.xlu0 %681
        %v683 = vsel %vm679, %v675, 0.0
        %684 = vadd.xlane.f32.xlu0 %v683
        %v685 = vpop.xlane.xlu0 %684
        %v686 = vrcp.pop 64.0
        %v687 = vmul.f32 64.0, %v686
        %v688 = vsub.f32 1.0, %v687
        %v689 = vmul.f32 %v686, %v688
        %v690 = vadd.f32 %v686, %v689
        %vm691 = vweird.f32 %v686
        %v692 = vsel %vm691, %v686, %v690
        %v693 = vmul.f32 %v682, %v692
        %v694 = vmul.f32 %v685, %v692
        %v695 = vsub.f32 %v673, %v693
        %v696 = vsub.f32 %v675, %v694
        %v697 = vmul.f32 %v695, %v695
        %v698 = vmul.f32 %v696, %v696
        %v699 = vsel %vm679, %v697, 0.0
        %700 = vadd.xlane.f32.xlu0 %v699
        %v701 = vpop.xlane.xlu0 %700
        %v702 = vsel %vm679, %v698, 0.0
        %703 = vadd.xlane.f32.xlu0 %v702
        %v704 = vpop.xlane.xlu0 %703
        %v705 = vmul.f32 %v701, %v692
        %v706 = vmul.f32 %v704, %v692
        %v707 = vadd.f32 %v705, 1e-05
        %v708 = vadd.f32 %v706, 1e-05
        %v709 = vrsqrt.pop %v707
        %v710 = vmul.f32 %v709, %v707
        %v711 = vmul.f32 %v710, %v709
        %v712 = vmul.f32 0.5, %v711
        %v713 = vsub.f32 1.5, %v712
        %v714 = vmul.f32 %v709, %v713
        %vm715 = vweird.f32 %v707
        %vm716 = vweird.f32 %v709
        %vm717 = vmor %vm715, %vm716
        %v718 = vsel %vm717, %v709, %v714
        %v719 = vrsqrt.pop %v708
        %v720 = vmul.f32 %v719, %v708
        %v721 = vmul.f32 %v720, %v719
        %v722 = vmul.f32 0.5, %v721
        %v723 = vsub.f32 1.5, %v722
        %v724 = vmul.f32 %v719, %v723
        %vm725 = vweird.f32 %v708
        %vm726 = vweird.f32 %v719
        %vm727 = vmor %vm725, %vm726
        %v728 = vsel %vm727, %v719, %v724
        %v729 = vmul.f32 %v695, %v718
        %v730 = vmul.f32 %v696, %v728
        %v732 = vperm.slane %v677, 0
        %v734 = vmul.f32 %v729, %v732
        %v735 = vmul.f32 %v730, %v732
        %v737 = vperm.slane %v678, 0
        %v739 = vadd.f32 %v734, %v737
        %v740 = vadd.f32 %v735, %v737
        %v741 = vpack.c.bf16 %v740, %v739
        %v742 = vld [vmem:[%s5] sm:$0xf]
        %v743 = vld [vmem:[%s5 + $0x4] sm:$0xf]
        %v744 = vld [vmem:[%s5 + $0x8] sm:$0xf]
        %v745 = vld [vmem:[%s5 + $0xc] sm:$0xf]
        %v746 = vld [vmem:[%s5 + $0x10] sm:$0xf]
        %v747 = vld [vmem:[%s5 + $0x14] sm:$0xf]
        %v748 = vld [vmem:[%s5 + $0x18] sm:$0xf]
        %v749 = vld [vmem:[%s5 + $0x1c] sm:$0xf]
        %v750 = vld [vmem:[%s6] sm:$0x1]
        %v752 = vperm.slane %v750, 0
        %v762 = vunpack.c.l.b16 %v742
        %v763 = vunpack.c.l.b16 %v743
        %v764 = vunpack.c.l.b16 %v744
        %v765 = vunpack.c.l.b16 %v745
        %v766 = vunpack.c.l.b16 %v746
        %v767 = vunpack.c.l.b16 %v747
        %v768 = vunpack.c.l.b16 %v748
        %v769 = vunpack.c.l.b16 %v749
        %v770 = vpack.c.b16 %v763, %v762
        %v771 = vpack.c.b16 %v765, %v764
        %v772 = vpack.c.b16 %v767, %v766
        %v773 = vpack.c.b16 %v769, %v768
        %v779 = vsel %vm679, %v741, 0
        %781 = vmatpush.bf16.msra.mxu0 0
        %782 = vmatpush.bf16.msra.mxu0 0
        %783 = vmatpush.bf16.msra.mxu0 0
        %784 = vmatpush.bf16.msra.mxu0 0
        %785 = vmatpush.bf16.msra.mxu0 %v773
        %786 = vmatpush.bf16.msra.mxu0 %v772
        %787 = vmatpush.bf16.msra.mxu0 %v771
        %788 = vmatpush.bf16.msra.mxu0 %v770
        %789 = vmatmul.bf16.gmra.mxu0 %v779
        %v790 = vpop.f32.mrf.mxu0
        %v791 = vadd.f32 %v752, %v790
        %v792 = vpop.f32.mrf.mxu0
        %v793 = vadd.f32 %v752, %v792
        %794 = vdwg.mxu0
        %v795 = vmul.f32 %v791, 0.5
        %v796 = vmul.f32 %v793, 0.5
        %v797 = vmul.f32 %v791, 0.70710677
        %v798 = vmul.f32 %v793, 0.70710677
        %v799 = vmul.f32 %v797, %v797
        %v800 = vmin.f32 16.0, %v799
        %v801 = vmul.f32 %v800, 2.1237322e-06
        %v802 = vadd.f32 %v801, 0.00028619796
        %v803 = vmul.f32 %v800, %v802
        %v804 = vadd.f32 %v803, 0.0036580483
        %v805 = vmul.f32 %v800, %v804
        %v806 = vadd.f32 %v805, 0.05243302
        %v807 = vmul.f32 %v800, %v806
        %v808 = vadd.f32 %v807, 0.18741608
        %v809 = vmul.f32 %v800, %v808
        %v810 = vadd.f32 %v809, 1.1283791
        %v811 = vmul.f32 %v797, %v810
        %v812 = vmul.f32 %v800, 3.8918573e-05
        %v813 = vadd.f32 %v812, 0.001143296
        %v814 = vmul.f32 %v800, %v813
        %v815 = vadd.f32 %v814, 0.014752088
        %v816 = vmul.f32 %v800, %v815
        %v817 = vadd.f32 %v816, 0.112945676
        %v818 = vmul.f32 %v800, %v817
        %v819 = vadd.f32 %v818, 0.4994258
        %v820 = vmul.f32 %v800, %v819
        %v821 = vadd.f32 %v820, 1.0
        %v822 = vrcp.pop %v821
        %v823 = vmul.f32 %v821, %v822
        %v824 = vsub.f32 1.0, %v823
        %v825 = vmul.f32 %v822, %v824
        %v826 = vadd.f32 %v822, %v825
        %vm827 = vweird.f32 %v821
        %vm828 = vweird.f32 %v822
        %vm829 = vmor %vm827, %vm828
        %v830 = vsel %vm829, %v822, %v826
        %v831 = vand.u32 2147483647, %v821
        %vm832 = vcmp.eq.f32.partialorder %v831, 8.507059e+37
        %v833 = vand.u32 %v821, 2147483648
        %v834 = vor.u32 1.1754944e-38, %v833
        %v835 = vsel %vm832, %v834, %v830
        %v836 = vmul.f32 %v811, %v835
        %v837 = vmin.f32 %v836, 1.0
        %v838 = vmax.f32 %v837, -1.0
        %v839 = vmul.f32 %v798, %v798
        %v840 = vmin.f32 16.0, %v839
        %v841 = vmul.f32 %v840, 2.1237322e-06
        %v842 = vadd.f32 %v841, 0.00028619796
        %v843 = vmul.f32 %v840, %v842
        %v844 = vadd.f32 %v843, 0.0036580483
        %v845 = vmul.f32 %v840, %v844
        %v846 = vadd.f32 %v845, 0.05243302
        %v847 = vmul.f32 %v840, %v846
        %v848 = vadd.f32 %v847, 0.18741608
        %v849 = vmul.f32 %v840, %v848
        %v850 = vadd.f32 %v849, 1.1283791
        %v851 = vmul.f32 %v798, %v850
        %v852 = vmul.f32 %v840, 3.8918573e-05
        %v853 = vadd.f32 %v852, 0.001143296
        %v854 = vmul.f32 %v840, %v853
        %v855 = vadd.f32 %v854, 0.014752088
        %v856 = vmul.f32 %v840, %v855
        %v857 = vadd.f32 %v856, 0.112945676
        %v858 = vmul.f32 %v840, %v857
        %v859 = vadd.f32 %v858, 0.4994258
        %v860 = vmul.f32 %v840, %v859
        %v861 = vadd.f32 %v860, 1.0
        %v862 = vrcp.pop %v861
        %v863 = vmul.f32 %v861, %v862
        %v864 = vsub.f32 1.0, %v863
        %v865 = vmul.f32 %v862, %v864
        %v866 = vadd.f32 %v862, %v865
        %vm867 = vweird.f32 %v861
        %vm868 = vweird.f32 %v862
        %vm869 = vmor %vm867, %vm868
        %v870 = vsel %vm869, %v862, %v866
        %v871 = vand.u32 2147483647, %v861
        %vm872 = vcmp.eq.f32.partialorder %v871, 8.507059e+37
        %v873 = vand.u32 %v861, 2147483648
        %v874 = vor.u32 1.1754944e-38, %v873
        %v875 = vsel %vm872, %v874, %v870
        %v876 = vmul.f32 %v851, %v875
        %v877 = vmin.f32 %v876, 1.0
        %v878 = vmax.f32 %v877, -1.0
        %v879 = vadd.f32 %v838, 1.0
        %v880 = vadd.f32 %v878, 1.0
        %v881 = vmul.f32 %v795, %v879
        %v882 = vmul.f32 %v796, %v880
        %v883 = vpack.c.bf16 %v882, %v881
        %v884 = vld [vmem:[%s7] sm:$0xf]
        %v885 = vld [vmem:[%s7 + $0x4] sm:$0xf]
        %v886 = vld [vmem:[%s7 + $0x8] sm:$0xf]
        %v887 = vld [vmem:[%s7 + $0xc] sm:$0xf]
        %v888 = vld [vmem:[%s7 + $0x10] sm:$0xf]
        %v889 = vld [vmem:[%s7 + $0x14] sm:$0xf]
        %v890 = vld [vmem:[%s7 + $0x18] sm:$0xf]
        %v891 = vld [vmem:[%s7 + $0x1c] sm:$0xf]
        %v892 = vld [vmem:[%s7 + $0x20] sm:$0xf]
        %v893 = vld [vmem:[%s7 + $0x24] sm:$0xf]
        %v894 = vld [vmem:[%s7 + $0x28] sm:$0xf]
        %v895 = vld [vmem:[%s7 + $0x2c] sm:$0xf]
        %v896 = vld [vmem:[%s7 + $0x30] sm:$0xf]
        %v897 = vld [vmem:[%s7 + $0x34] sm:$0xf]
        %v898 = vld [vmem:[%s7 + $0x38] sm:$0xf]
        %v899 = vld [vmem:[%s7 + $0x3c] sm:$0xf]
        %v900 = vld [vmem:[%s8] sm:$0x1]
        %v902 = vperm.slane %v900, 0
        %v920 = vunpack.c.l.b16 %v884
        %v921 = vunpack.c.l.b16 %v885
        %v922 = vunpack.c.l.b16 %v886
        %v923 = vunpack.c.l.b16 %v887
        %v924 = vunpack.c.l.b16 %v888
        %v925 = vunpack.c.l.b16 %v889
        %v926 = vunpack.c.l.b16 %v890
        %v927 = vunpack.c.l.b16 %v891
        %v928 = vunpack.c.l.b16 %v892
        %v929 = vunpack.c.l.b16 %v893
        %v930 = vunpack.c.l.b16 %v894
        %v931 = vunpack.c.l.b16 %v895
        %v932 = vunpack.c.l.b16 %v896
        %v933 = vunpack.c.l.b16 %v897
        %v934 = vunpack.c.l.b16 %v898
        %v935 = vunpack.c.l.b16 %v899
        %v936 = vpack.c.b16 %v921, %v920
        %v937 = vpack.c.b16 %v923, %v922
        %v938 = vpack.c.b16 %v925, %v924
        %v939 = vpack.c.b16 %v927, %v926
        %v940 = vpack.c.b16 %v929, %v928
        %v941 = vpack.c.b16 %v931, %v930
        %v942 = vpack.c.b16 %v933, %v932
        %v943 = vpack.c.b16 %v935, %v934
        %952 = vmatpush.bf16.msra.mxu0 %v943
        %953 = vmatpush.bf16.msra.mxu0 %v942
        %954 = vmatpush.bf16.msra.mxu0 %v941
        %955 = vmatpush.bf16.msra.mxu0 %v940
        %956 = vmatpush.bf16.msra.mxu0 %v939
        %957 = vmatpush.bf16.msra.mxu0 %v938
        %958 = vmatpush.bf16.msra.mxu0 %v937
        %959 = vmatpush.bf16.msra.mxu0 %v936
        %960 = vmatmul.bf16.gmra.mxu0 %v883
        %v961 = vpop.f32.mrf.mxu0
        %v962 = vadd.f32 %v902, %v961
        %v963 = vpop.f32.mrf.mxu0
        %v964 = vadd.f32 %v902, %v963
        %965 = vdwg.mxu0
        %v966 = vmul.f32 %v962, 0.5
        %v967 = vmul.f32 %v964, 0.5
        %v968 = vmul.f32 %v962, 0.70710677
        %v969 = vmul.f32 %v964, 0.70710677
        %v970 = vmul.f32 %v968, %v968
        %v971 = vmin.f32 16.0, %v970
        %v972 = vmul.f32 %v971, 2.1237322e-06
        %v973 = vadd.f32 %v972, 0.00028619796
        %v974 = vmul.f32 %v971, %v973
        %v975 = vadd.f32 %v974, 0.0036580483
        %v976 = vmul.f32 %v971, %v975
        %v977 = vadd.f32 %v976, 0.05243302
        %v978 = vmul.f32 %v971, %v977
        %v979 = vadd.f32 %v978, 0.18741608
        %v980 = vmul.f32 %v971, %v979
        %v981 = vadd.f32 %v980, 1.1283791
        %v982 = vmul.f32 %v968, %v981
        %v983 = vmul.f32 %v971, 3.8918573e-05
        %v984 = vadd.f32 %v983, 0.001143296
        %v985 = vmul.f32 %v971, %v984
        %v986 = vadd.f32 %v985, 0.014752088
        %v987 = vmul.f32 %v971, %v986
        %v988 = vadd.f32 %v987, 0.112945676
        %v989 = vmul.f32 %v971, %v988
        %v990 = vadd.f32 %v989, 0.4994258
        %v991 = vmul.f32 %v971, %v990
        %v992 = vadd.f32 %v991, 1.0
        %v993 = vrcp.pop %v992
        %v994 = vmul.f32 %v992, %v993
        %v995 = vsub.f32 1.0, %v994
        %v996 = vmul.f32 %v993, %v995
        %v997 = vadd.f32 %v993, %v996
        %vm998 = vweird.f32 %v992
        %vm999 = vweird.f32 %v993
        %vm1000 = vmor %vm998, %vm999
        %v1001 = vsel %vm1000, %v993, %v997
        %v1002 = vand.u32 2147483647, %v992
        %vm1003 = vcmp.eq.f32.partialorder %v1002, 8.507059e+37
        %v1004 = vand.u32 %v992, 2147483648
        %v1005 = vor.u32 1.1754944e-38, %v1004
        %v1006 = vsel %vm1003, %v1005, %v1001
        %v1007 = vmul.f32 %v982, %v1006
        %v1008 = vmin.f32 %v1007, 1.0
        %v1009 = vmax.f32 %v1008, -1.0
        %v1010 = vmul.f32 %v969, %v969
        %v1011 = vmin.f32 16.0, %v1010
        %v1012 = vmul.f32 %v1011, 2.1237322e-06
        %v1013 = vadd.f32 %v1012, 0.00028619796
        %v1014 = vmul.f32 %v1011, %v1013
        %v1015 = vadd.f32 %v1014, 0.0036580483
        %v1016 = vmul.f32 %v1011, %v1015
        %v1017 = vadd.f32 %v1016, 0.05243302
        %v1018 = vmul.f32 %v1011, %v1017
        %v1019 = vadd.f32 %v1018, 0.18741608
        %v1020 = vmul.f32 %v1011, %v1019
        %v1021 = vadd.f32 %v1020, 1.1283791
        %v1022 = vmul.f32 %v969, %v1021
        %v1023 = vmul.f32 %v1011, 3.8918573e-05
        %v1024 = vadd.f32 %v1023, 0.001143296
        %v1025 = vmul.f32 %v1011, %v1024
        %v1026 = vadd.f32 %v1025, 0.014752088
        %v1027 = vmul.f32 %v1011, %v1026
        %v1028 = vadd.f32 %v1027, 0.112945676
        %v1029 = vmul.f32 %v1011, %v1028
        %v1030 = vadd.f32 %v1029, 0.4994258
        %v1031 = vmul.f32 %v1011, %v1030
        %v1032 = vadd.f32 %v1031, 1.0
        %v1033 = vrcp.pop %v1032
        %v1034 = vmul.f32 %v1032, %v1033
        %v1035 = vsub.f32 1.0, %v1034
        %v1036 = vmul.f32 %v1033, %v1035
        %v1037 = vadd.f32 %v1033, %v1036
        %vm1038 = vweird.f32 %v1032
        %vm1039 = vweird.f32 %v1033
        %vm1040 = vmor %vm1038, %vm1039
        %v1041 = vsel %vm1040, %v1033, %v1037
        %v1042 = vand.u32 2147483647, %v1032
        %vm1043 = vcmp.eq.f32.partialorder %v1042, 8.507059e+37
        %v1044 = vand.u32 %v1032, 2147483648
        %v1045 = vor.u32 1.1754944e-38, %v1044
        %v1046 = vsel %vm1043, %v1045, %v1041
        %v1047 = vmul.f32 %v1022, %v1046
        %v1048 = vmin.f32 %v1047, 1.0
        %v1049 = vmax.f32 %v1048, -1.0
        %v1050 = vadd.f32 %v1009, 1.0
        %v1051 = vadd.f32 %v1049, 1.0
        %v1052 = vmul.f32 %v966, %v1050
        %v1053 = vmul.f32 %v967, %v1051
        %v1054 = vpack.c.bf16 %v1053, %v1052
        %v1055 = vld [vmem:[%s9] sm:$0xf]
        %v1056 = vld [vmem:[%s9 + $0x4] sm:$0xf]
        %v1057 = vld [vmem:[%s9 + $0x8] sm:$0xf]
        %v1058 = vld [vmem:[%s9 + $0xc] sm:$0xf]
        %v1059 = vld [vmem:[%s9 + $0x10] sm:$0xf]
        %v1060 = vld [vmem:[%s9 + $0x14] sm:$0xf]
        %v1061 = vld [vmem:[%s9 + $0x18] sm:$0xf]
        %v1062 = vld [vmem:[%s9 + $0x1c] sm:$0xf]
        %v1063 = vld [vmem:[%s10] sm:$0x1]
        %v1065 = vperm.slane %v1063, 0
        %v1075 = vunpack.c.l.b16 %v1055
        %v1076 = vunpack.c.l.b16 %v1056
        %v1077 = vunpack.c.l.b16 %v1057
        %v1078 = vunpack.c.l.b16 %v1058
        %v1079 = vunpack.c.l.b16 %v1059
        %v1080 = vunpack.c.l.b16 %v1060
        %v1081 = vunpack.c.l.b16 %v1061
        %v1082 = vunpack.c.l.b16 %v1062
        %v1083 = vpack.c.b16 %v1076, %v1075
        %v1084 = vpack.c.b16 %v1078, %v1077
        %v1085 = vpack.c.b16 %v1080, %v1079
        %v1086 = vpack.c.b16 %v1082, %v1081
        %v1092 = vsel %vm679, %v1054, 0
        %1094 = vmatpush.bf16.msra.mxu0 0
        %1095 = vmatpush.bf16.msra.mxu0 0
        %1096 = vmatpush.bf16.msra.mxu0 0
        %1097 = vmatpush.bf16.msra.mxu0 0
        %1098 = vmatpush.bf16.msra.mxu0 %v1086
        %1099 = vmatpush.bf16.msra.mxu0 %v1085
        %1100 = vmatpush.bf16.msra.mxu0 %v1084
        %1101 = vmatpush.bf16.msra.mxu0 %v1083
        %1102 = vmatmul.bf16.gmra.mxu0 %v1092
        %v1103 = vpop.f32.mrf.mxu0
        %v1104 = vadd.f32 %v1065, %v1103
        %v1105 = vpop.f32.mrf.mxu0
        %v1106 = vadd.f32 %v1065, %v1105
        %1107 = vdwg.mxu0
        %v1108 = vmul.f32 %v1104, 0.5
        %v1109 = vmul.f32 %v1106, 0.5
        %v1110 = vmul.f32 %v1104, 0.70710677
        %v1111 = vmul.f32 %v1106, 0.70710677
        %v1112 = vmul.f32 %v1110, %v1110
        %v1113 = vmin.f32 16.0, %v1112
        %v1114 = vmul.f32 %v1113, 2.1237322e-06
        %v1115 = vadd.f32 %v1114, 0.00028619796
        %v1116 = vmul.f32 %v1113, %v1115
        %v1117 = vadd.f32 %v1116, 0.0036580483
        %v1118 = vmul.f32 %v1113, %v1117
        %v1119 = vadd.f32 %v1118, 0.05243302
        %v1120 = vmul.f32 %v1113, %v1119
        %v1121 = vadd.f32 %v1120, 0.18741608
        %v1122 = vmul.f32 %v1113, %v1121
        %v1123 = vadd.f32 %v1122, 1.1283791
        %v1124 = vmul.f32 %v1110, %v1123
        %v1125 = vmul.f32 %v1113, 3.8918573e-05
        %v1126 = vadd.f32 %v1125, 0.001143296
        %v1127 = vmul.f32 %v1113, %v1126
        %v1128 = vadd.f32 %v1127, 0.014752088
        %v1129 = vmul.f32 %v1113, %v1128
        %v1130 = vadd.f32 %v1129, 0.112945676
        %v1131 = vmul.f32 %v1113, %v1130
        %v1132 = vadd.f32 %v1131, 0.4994258
        %v1133 = vmul.f32 %v1113, %v1132
        %v1134 = vadd.f32 %v1133, 1.0
        %v1135 = vrcp.pop %v1134
        %v1136 = vmul.f32 %v1134, %v1135
        %v1137 = vsub.f32 1.0, %v1136
        %v1138 = vmul.f32 %v1135, %v1137
        %v1139 = vadd.f32 %v1135, %v1138
        %vm1140 = vweird.f32 %v1134
        %vm1141 = vweird.f32 %v1135
        %vm1142 = vmor %vm1140, %vm1141
        %v1143 = vsel %vm1142, %v1135, %v1139
        %v1144 = vand.u32 2147483647, %v1134
        %vm1145 = vcmp.eq.f32.partialorder %v1144, 8.507059e+37
        %v1146 = vand.u32 %v1134, 2147483648
        %v1147 = vor.u32 1.1754944e-38, %v1146
        %v1148 = vsel %vm1145, %v1147, %v1143
        %v1149 = vmul.f32 %v1124, %v1148
        %v1150 = vmin.f32 %v1149, 1.0
        %v1151 = vmax.f32 %v1150, -1.0
        %v1152 = vmul.f32 %v1111, %v1111
        %v1153 = vmin.f32 16.0, %v1152
        %v1154 = vmul.f32 %v1153, 2.1237322e-06
        %v1155 = vadd.f32 %v1154, 0.00028619796
        %v1156 = vmul.f32 %v1153, %v1155
        %v1157 = vadd.f32 %v1156, 0.0036580483
        %v1158 = vmul.f32 %v1153, %v1157
        %v1159 = vadd.f32 %v1158, 0.05243302
        %v1160 = vmul.f32 %v1153, %v1159
        %v1161 = vadd.f32 %v1160, 0.18741608
        %v1162 = vmul.f32 %v1153, %v1161
        %v1163 = vadd.f32 %v1162, 1.1283791
        %v1164 = vmul.f32 %v1111, %v1163
        %v1165 = vmul.f32 %v1153, 3.8918573e-05
        %v1166 = vadd.f32 %v1165, 0.001143296
        %v1167 = vmul.f32 %v1153, %v1166
        %v1168 = vadd.f32 %v1167, 0.014752088
        %v1169 = vmul.f32 %v1153, %v1168
        %v1170 = vadd.f32 %v1169, 0.112945676
        %v1171 = vmul.f32 %v1153, %v1170
        %v1172 = vadd.f32 %v1171, 0.4994258
        %v1173 = vmul.f32 %v1153, %v1172
        %v1174 = vadd.f32 %v1173, 1.0
        %v1175 = vrcp.pop %v1174
        %v1176 = vmul.f32 %v1174, %v1175
        %v1177 = vsub.f32 1.0, %v1176
        %v1178 = vmul.f32 %v1175, %v1177
        %v1179 = vadd.f32 %v1175, %v1178
        %vm1180 = vweird.f32 %v1174
        %vm1181 = vweird.f32 %v1175
        %vm1182 = vmor %vm1180, %vm1181
        %v1183 = vsel %vm1182, %v1175, %v1179
        %v1184 = vand.u32 2147483647, %v1174
        %vm1185 = vcmp.eq.f32.partialorder %v1184, 8.507059e+37
        %v1186 = vand.u32 %v1174, 2147483648
        %v1187 = vor.u32 1.1754944e-38, %v1186
        %v1188 = vsel %vm1185, %v1187, %v1183
        %v1189 = vmul.f32 %v1164, %v1188
        %v1190 = vmin.f32 %v1189, 1.0
        %v1191 = vmax.f32 %v1190, -1.0
        %v1192 = vadd.f32 %v1151, 1.0
        %v1193 = vadd.f32 %v1191, 1.0
        %v1194 = vmul.f32 %v1108, %v1192
        %v1195 = vmul.f32 %v1109, %v1193
        %v1196 = vpack.c.bf16 %v1195, %v1194
        %v1197 = vld [vmem:[%s11] sm:$0xf]
        %v1198 = vld [vmem:[%s11 + $0x4] sm:$0xf]
        %v1199 = vld [vmem:[%s11 + $0x8] sm:$0xf]
        %v1200 = vld [vmem:[%s11 + $0xc] sm:$0xf]
        %v1201 = vld [vmem:[%s11 + $0x10] sm:$0xf]
        %v1202 = vld [vmem:[%s11 + $0x14] sm:$0xf]
        %v1203 = vld [vmem:[%s11 + $0x18] sm:$0xf]
        %v1204 = vld [vmem:[%s11 + $0x1c] sm:$0xf]
        %v1205 = vld [vmem:[%s11 + $0x20] sm:$0xf]
        %v1206 = vld [vmem:[%s11 + $0x24] sm:$0xf]
        %v1207 = vld [vmem:[%s11 + $0x28] sm:$0xf]
        %v1208 = vld [vmem:[%s11 + $0x2c] sm:$0xf]
        %v1209 = vld [vmem:[%s11 + $0x30] sm:$0xf]
        %v1210 = vld [vmem:[%s11 + $0x34] sm:$0xf]
        %v1211 = vld [vmem:[%s11 + $0x38] sm:$0xf]
        %v1212 = vld [vmem:[%s11 + $0x3c] sm:$0xf]
        %v1213 = vld [vmem:[%s12] sm:$0x1]
        %v1215 = vperm.slane %v1213, 0
        %v1233 = vunpack.c.l.b16 %v1197
        %v1234 = vunpack.c.l.b16 %v1198
        %v1235 = vunpack.c.l.b16 %v1199
        %v1236 = vunpack.c.l.b16 %v1200
        %v1237 = vunpack.c.l.b16 %v1201
        %v1238 = vunpack.c.l.b16 %v1202
        %v1239 = vunpack.c.l.b16 %v1203
        %v1240 = vunpack.c.l.b16 %v1204
        %v1241 = vunpack.c.l.b16 %v1205
        %v1242 = vunpack.c.l.b16 %v1206
        %v1243 = vunpack.c.l.b16 %v1207
        %v1244 = vunpack.c.l.b16 %v1208
        %v1245 = vunpack.c.l.b16 %v1209
        %v1246 = vunpack.c.l.b16 %v1210
        %v1247 = vunpack.c.l.b16 %v1211
        %v1248 = vunpack.c.l.b16 %v1212
        %v1249 = vpack.c.b16 %v1234, %v1233
        %v1250 = vpack.c.b16 %v1236, %v1235
        %v1251 = vpack.c.b16 %v1238, %v1237
        %v1252 = vpack.c.b16 %v1240, %v1239
        %v1253 = vpack.c.b16 %v1242, %v1241
        %v1254 = vpack.c.b16 %v1244, %v1243
        %v1255 = vpack.c.b16 %v1246, %v1245
        %v1256 = vpack.c.b16 %v1248, %v1247
        %1265 = vmatpush.bf16.msra.mxu0 %v1256
        %1266 = vmatpush.bf16.msra.mxu0 %v1255
        %1267 = vmatpush.bf16.msra.mxu0 %v1254
        %1268 = vmatpush.bf16.msra.mxu0 %v1253
        %1269 = vmatpush.bf16.msra.mxu0 %v1252
        %1270 = vmatpush.bf16.msra.mxu0 %v1251
        %1271 = vmatpush.bf16.msra.mxu0 %v1250
        %1272 = vmatpush.bf16.msra.mxu0 %v1249
        %1273 = vmatmul.bf16.gmra.mxu0 %v1196
        %v1274 = vpop.f32.mrf.mxu0
        %v1275 = vadd.f32 %v1215, %v1274
        %v1276 = vpop.f32.mrf.mxu0
        %v1277 = vadd.f32 %v1215, %v1276
        %1278 = vdwg.mxu0
        %v1279 = vpack.c.bf16 %v675, %v673
        %v1280 = vld [vmem:[%s13] sm:$0xf]
        %v1281 = vld [vmem:[%s13 + $0x4] sm:$0xf]
        %v1282 = vld [vmem:[%s13 + $0x8] sm:$0xf]
        %v1283 = vld [vmem:[%s13 + $0xc] sm:$0xf]
        %v1284 = vld [vmem:[%s13 + $0x10] sm:$0xf]
        %v1285 = vld [vmem:[%s13 + $0x14] sm:$0xf]
        %v1286 = vld [vmem:[%s13 + $0x18] sm:$0xf]
        %v1287 = vld [vmem:[%s13 + $0x1c] sm:$0xf]
        %v1288 = vld [vmem:[%s14] sm:$0x1]
        %v1290 = vperm.slane %v1288, 0
        %v1300 = vunpack.c.l.b16 %v1280
        %v1301 = vunpack.c.l.b16 %v1281
        %v1302 = vunpack.c.l.b16 %v1282
        %v1303 = vunpack.c.l.b16 %v1283
        %v1304 = vunpack.c.l.b16 %v1284
        %v1305 = vunpack.c.l.b16 %v1285
        %v1306 = vunpack.c.l.b16 %v1286
        %v1307 = vunpack.c.l.b16 %v1287
        %v1308 = vpack.c.b16 %v1301, %v1300
        %v1309 = vpack.c.b16 %v1303, %v1302
        %v1310 = vpack.c.b16 %v1305, %v1304
        %v1311 = vpack.c.b16 %v1307, %v1306
        %v1317 = vsel %vm679, %v1279, 0
        %1319 = vmatpush.bf16.msra.mxu0 0
        %1320 = vmatpush.bf16.msra.mxu0 0
        %1321 = vmatpush.bf16.msra.mxu0 0
        %1322 = vmatpush.bf16.msra.mxu0 0
        %1323 = vmatpush.bf16.msra.mxu0 %v1311
        %1324 = vmatpush.bf16.msra.mxu0 %v1310
        %1325 = vmatpush.bf16.msra.mxu0 %v1309
        %1326 = vmatpush.bf16.msra.mxu0 %v1308
        %1327 = vmatmul.bf16.gmra.mxu0 %v1317
        %v1328 = vpop.f32.mrf.mxu0
        %v1329 = vadd.f32 %v1290, %v1328
        %v1330 = vpop.f32.mrf.mxu0
        %v1331 = vadd.f32 %v1290, %v1330
        %1332 = vdwg.mxu0
        %v1333 = vadd.f32 %v1275, %v1329
        %v1334 = vadd.f32 %v1277, %v1331
        %v1335 = vld [vmem:[%s15] sm:$0x1]
        %v1336 = vld [vmem:[%s16] sm:$0x1]
        %1337 = vadd.xlane.f32.xlu0 %v1333
        %v1338 = vpop.xlane.xlu0 %1337
        %1339 = vadd.xlane.f32.xlu0 %v1334
        %v1340 = vpop.xlane.xlu0 %1339
        %v1341 = vrcp.pop 128.0
        %v1342 = vmul.f32 128.0, %v1341
        %v1343 = vsub.f32 1.0, %v1342
        %v1344 = vmul.f32 %v1341, %v1343
        %v1345 = vadd.f32 %v1341, %v1344
        %vm1346 = vweird.f32 %v1341
        %v1347 = vsel %vm1346, %v1341, %v1345
        %v1348 = vmul.f32 %v1338, %v1347
        %v1349 = vmul.f32 %v1340, %v1347
        %v1350 = vsub.f32 %v1333, %v1348
        %v1351 = vsub.f32 %v1334, %v1349
        %v1352 = vmul.f32 %v1350, %v1350
        %v1353 = vmul.f32 %v1351, %v1351
        %1354 = vadd.xlane.f32.xlu0 %v1352
        %v1355 = vpop.xlane.xlu0 %1354
        %1356 = vadd.xlane.f32.xlu0 %v1353
        %v1357 = vpop.xlane.xlu0 %1356
        %v1358 = vmul.f32 %v1355, %v1347
        %v1359 = vmul.f32 %v1357, %v1347
        %v1360 = vadd.f32 %v1358, 1e-05
        %v1361 = vadd.f32 %v1359, 1e-05
        %v1362 = vrsqrt.pop %v1360
        %v1363 = vmul.f32 %v1362, %v1360
        %v1364 = vmul.f32 %v1363, %v1362
        %v1365 = vmul.f32 0.5, %v1364
        %v1366 = vsub.f32 1.5, %v1365
        %v1367 = vmul.f32 %v1362, %v1366
        %vm1368 = vweird.f32 %v1360
        %vm1369 = vweird.f32 %v1362
        %vm1370 = vmor %vm1368, %vm1369
        %v1371 = vsel %vm1370, %v1362, %v1367
        %v1372 = vrsqrt.pop %v1361
        %v1373 = vmul.f32 %v1372, %v1361
        %v1374 = vmul.f32 %v1373, %v1372
        %v1375 = vmul.f32 0.5, %v1374
        %v1376 = vsub.f32 1.5, %v1375
        %v1377 = vmul.f32 %v1372, %v1376
        %vm1378 = vweird.f32 %v1361
        %vm1379 = vweird.f32 %v1372
        %vm1380 = vmor %vm1378, %vm1379
        %v1381 = vsel %vm1380, %v1372, %v1377
        %v1382 = vmul.f32 %v1350, %v1371
        %v1383 = vmul.f32 %v1351, %v1381
        %v1385 = vperm.slane %v1335, 0
        %v1387 = vmul.f32 %v1382, %v1385
        %v1388 = vmul.f32 %v1383, %v1385
        %v1390 = vperm.slane %v1336, 0
        %v1392 = vadd.f32 %v1387, %v1390
        %v1393 = vadd.f32 %v1388, %v1390
        %1394 = vst [vmem:[%s583] sm:$0xff] %v1392
        %1395 = vst [vmem:[%s583 + $0x8] sm:$0xff] %v1393
        %s1396 = sand.u32 %s405, 1
        %s1397 = scalar_lea.sflag [#allocation4], %s1396
        %s1398 = sand.u32 %s405, 1
        %s1399 = smul.addr %s1398, 16
        %s1400 = scalar_lea.vmem [#allocation7], %s1399
        // Predicated region
        $region97: #{tpu_custom_call.1} parent=87 // pred_check
          %p1401 = pneg %p415
        $region98: #{tpu_custom_call.1} parent=87 // pred_check_branch
          %1403 = sbr.rel (%p1401) target = $region100
        $region99: #{tpu_custom_call.1} parent=87 // pred_region
          %s1404 = smul.u32 2, %s35
          %1406 = vsyncadd %s1397, 0
          %s1407 = smul.addr %s1404, 8
          %s1408 = scalar_lea.hbm %s17, %s1407
          %s1409 = sshll.u32 %s1400, 4
          %s1410 = int_to_ptr.vmem [resolvable:$true] %s1409
          %s1411 = sshll.u32 %s1408, 4
          %s1412 = int_to_ptr.hbm [resolvable:$true] %s1411
          %1417 = dma.vmem_to_hbm [thread:$0]  %s1410, 256, %s1412, %s1397, 128, 128, 8
        $region100: #{tpu_custom_call.1} parent=87 // pred_fallthru
          _
      $region88: #{tpu_custom_call.1} parent=5 // pred_fallthru
        _
      %p1418 = scmp.le.s32.totalorder 2, %s30
      // Predicated region
      $region101: #{tpu_custom_call.1} parent=5 // pred_check
        %p1419 = pneg %p1418
      $region102: #{tpu_custom_call.1} parent=5 // pred_check_branch
        %1421 = sbr.rel (%p1419) target = $region104
      $region103: #{tpu_custom_call.1} parent=5 // pred_region
        %s1422 = ssub.s32 %s30, 2
        // Predicated region
        $region105: #{tpu_custom_call.1} parent=103 // pred_check
          %p1423 = pneg %p421
        $region106: #{tpu_custom_call.1} parent=103 // pred_check_branch
          %1425 = sbr.rel (%p1423) target = $region108
        $region107: #{tpu_custom_call.1} parent=103 // pred_region
          %s1426 = sand.u32 %s406, 1
          %s1427 = scalar_lea.sflag [#allocation4], %s1426
          %s1428 = sand.u32 %s406, 1
          %s1429 = smul.addr %s1428, 16
          %s1430 = scalar_lea.vmem [#allocation7], %s1429
          %1432 = dma.done %s1427, 256
        $region108: #{tpu_custom_call.1} parent=103 // pred_fallthru
          _
      $region104: #{tpu_custom_call.1} parent=5 // pred_fallthru
        _
    $region6: #{tpu_custom_call.1} parent=1 // loop_footer
      %s34 = sadd.s32 1, %s30
    $region7: #{tpu_custom_call.1} parent=1 // loop_footer_branch
      %29 = sbr.rel target = $region3
    $region8: #{tpu_custom_call.1} parent=1 // loop_exit
      _
    %1433 = vsyncpa [#allocation3], 1
    %s1434 = scalar_lea.sflag [#allocation3], 1
    %1435 = vsyncpa %s1434, 1
    %1436 = vsyncpa [#allocation6], 1
    %1437 = vsyncpa [#allocation4], 1
    %s1438 = scalar_lea.sflag [#allocation4], 1
    %1439 = vsyncpa %s1438, 1

</llo_original>
